<compile_context>
chip_gen: v7x
topology: tpu7x:2x2x1
jax: 0.10.0
libtpu: 0.0.40
codegen_flags: <defaults>
</compile_context>

<pallas_src>
import functools

import jax
import jax.numpy as jnp
from jax import lax
from jax.experimental import pallas as pl
from jax.experimental.pallas import tpu as pltpu

# ----------------------------- config (small) -----------------------------
BATCH = 2
SEQ = 8
INPUT_SIZE = 3
HIDDEN = 32
NUM_HEADS = 4
NUM_LAYERS = 2          # module default is 10; kept small for the demo
FFN = 4 * HIDDEN
LN_EPS = 1e-5


# ------------------------------ Pallas kernel ------------------------------
def fused_encoder_kernel(x_ref, wqkv_ref, wo_ref, w1_ref, w2_ref, vec_ref,
                         o_ref, *, num_heads, hidden, ffn, eps):
    """grid = (batch, layer).  o_ref is the VMEM-resident (S, H) activation."""
    l = pl.program_id(1)
    H, F = hidden, ffn
    hd = H // num_heads

    # Seed the resident activation from the embedded input (once per batch
    # block); aliased buffers so no extra HBM round trip.
    @pl.when(l == 0)
    def _seed():
        o_ref[...] = x_ref[...]

    x = o_ref[...]                                    # (S, H)

    # Packed per-layer vector slab: one (8, 128) tile per layer.
    vec = vec_ref[0]
    bqkv = vec[0:1, :3 * H]
    bo, ln1w, ln1b = vec[1:2, :H], vec[2:3, :H], vec[3:4, :H]
    b1 = vec[4:5, :F]
    b2, ln2w, ln2b = vec[5:6, :H], vec[6:7, :H], vec[7:8, :H]

    # ---- fused QKV projection (weights pre-transposed to (in, out);
    #      1/sqrt(head_dim) folded into the Q columns host-side) ----
    qkv = jnp.dot(x, wqkv_ref[0], preferred_element_type=jnp.float32) + bqkv
    q, k, v = qkv[:, :H], qkv[:, H:2 * H], qkv[:, 2 * H:3 * H]

    # ---- exact per-head attention (scores are (S, S) per head; heads
    #      stitched back by column slices) ----
    ctx_heads = []
    for h in range(num_heads):
        cs = slice(h * hd, (h + 1) * hd)
        s = lax.dot_general(q[:, cs], k[:, cs],
                            dimension_numbers=(((1,), (1,)), ((), ())),
                            preferred_element_type=jnp.float32)   # (S, S)
        s = s - jnp.max(s, axis=-1, keepdims=True)
        p = jnp.exp(s)
        p = p / jnp.sum(p, axis=-1, keepdims=True)   # exact divide
        ctx_heads.append(jnp.dot(p, v[:, cs],
                                 preferred_element_type=jnp.float32))
    ctx = jnp.concatenate(ctx_heads, axis=-1)         # (S, H)

    attn = jnp.dot(ctx, wo_ref[0], preferred_element_type=jnp.float32) + bo
    # TODO(synk): dropout layers omitted (deterministic eval-mode semantics).

    # ---- post-norm block 1 ----
    xr = x + attn
    mu = jnp.mean(xr, axis=-1, keepdims=True)
    var = jnp.mean((xr - mu) ** 2, axis=-1, keepdims=True)
    xn = (xr - mu) * lax.rsqrt(var + eps) * ln1w + ln1b

    # ---- feed-forward (relu); F = 128 stays the lane axis ----
    hh = jnp.dot(xn, w1_ref[0], preferred_element_type=jnp.float32) + b1
    hh = jnp.maximum(hh, 0.0)
    hh = jnp.dot(hh, w2_ref[0], preferred_element_type=jnp.float32) + b2

    # ---- post-norm block 2 ----
    yr = xn + hh
    mu2 = jnp.mean(yr, axis=-1, keepdims=True)
    var2 = jnp.mean((yr - mu2) ** 2, axis=-1, keepdims=True)
    o_ref[...] = (yr - mu2) * lax.rsqrt(var2 + eps) * ln2w + ln2b


# ------------------------------- wrapper -------------------------------
def transformer_encoder_forward(x, params):
    B, S, I = x.shape
    H = params["w_emb"].shape[0]
    L = len(params["layers"])
    F = params["layers"][0]["ff1_w"].shape[0]
    hd = H // NUM_HEADS
    scale = 1.0 / jnp.sqrt(jnp.float32(hd))
    VW = max(F, 3 * H)                                  # packed-vector width

    # ---- embedding + positional encoding in XLA (trivially fused there) ----
    x_emb = (x.reshape(B * S, I) @ params["w_emb"].T
             + params["b_emb"]
             + jnp.tile(params["pos_emb"], (B, 1))).astype(jnp.float32)

    # 1/sqrt(head_dim) folded into the Q third of the fused QKV weight/bias.
    scale_vec = jnp.concatenate(
        [jnp.full((H,), scale, jnp.float32), jnp.ones((2 * H,), jnp.float32)])

    st = lambda f: jnp.stack([f(p) for p in params["layers"]])
    # NOTE: these stacked slabs could be cast to bf16 to halve the recurring
    # weight DMA bytes; kept f32 to preserve tight agreement with the f32
    # reference.
    wqkv = st(lambda p: p["in_w"].T * scale_vec[None, :])     # (L, H, 3H)
    wo = st(lambda p: p["out_w"].T)                           # (L, H, H)
    w1 = st(lambda p: p["ff1_w"].T)                           # (L, H, F)
    w2 = st(lambda p: p["ff2_w"].T)                           # (L, F, H)

    def pack_vecs(p):   # one (8, VW) tile holding every per-layer vector
        pad = lambda vv: jnp.pad(vv.reshape(-1), (0, VW - vv.size))
        return jnp.stack([
            pad(p["in_b"][0] * scale_vec), pad(p["out_b"][0]),
            pad(p["ln1_w"][0]), pad(p["ln1_b"][0]),
            pad(p["ff1_b"][0]), pad(p["ff2_b"][0]),
            pad(p["ln2_w"][0]), pad(p["ln2_b"][0])])
    vecs = st(pack_vecs)                                      # (L, 8, VW)

    per_layer = lambda d0, d1: pl.BlockSpec((1, d0, d1), lambda b, l: (l, 0, 0))
    act_spec = pl.BlockSpec((S, H), lambda b, l: (b, 0))

    kernel = functools.partial(fused_encoder_kernel, num_heads=NUM_HEADS,
                               hidden=H, ffn=F, eps=LN_EPS)

    out = pl.pallas_call(
        kernel,
        out_shape=jax.ShapeDtypeStruct((B * S, H), jnp.float32),
        grid=(B, L),
        in_specs=[
            act_spec,                    # embedded activation (aliased to out)
            per_layer(H, 3 * H),         # fused Wqkv
            per_layer(H, H),             # Wo
            per_layer(H, F),             # W1
            per_layer(F, H),             # W2
            per_layer(8, VW),            # packed bias / LN slab
        ],
        # Constant block index over the layer axis -> activation stays
        # resident in VMEM across all layers; one HBM writeback per batch
        # block.  Batch axis is "parallel" (2 TCs on v7x; exact split since
        # attention is per-sample).
        out_specs=act_spec,
        input_output_aliases={0: 0},
        compiler_params=pltpu.CompilerParams(
            dimension_semantics=("parallel", "arbitrary")),
    )(x_emb, wqkv, wo, w1, w2, vecs)

    return out.reshape(B, S, H)


# -------------------- pure-JAX reference (for the check) --------------------
def _layernorm_ref(x, w, b):
    mu = jnp.mean(x, axis=-1, keepdims=True)
    var = jnp.mean((x - mu) ** 2, axis=-1, keepdims=True)
    return (x - mu) * lax.rsqrt(var + LN_EPS) * w + b


def _layer_ref(x, p):
    B, S, H = x.shape
    hd = H // NUM_HEADS
    qkv = x @ p["in_w"].T + p["in_b"]                       # (B, S, 3H)
    q, k, v = qkv[..., :H], qkv[..., H:2 * H], qkv[..., 2 * H:]
    q = q.reshape(B, S, NUM_HEADS, hd).transpose(0, 2, 1, 3) / jnp.sqrt(hd)
    k = k.reshape(B, S, NUM_HEADS, hd).transpose(0, 2, 1, 3)
    v = v.reshape(B, S, NUM_HEADS, hd).transpose(0, 2, 1, 3)
    s = jnp.einsum("bhqd,bhkd->bhqk", q, k)
    p_attn = jax.nn.softmax(s, axis=-1)
    a = jnp.einsum("bhqk,bhkd->bhqd", p_attn, v)
    a = a.transpose(0, 2, 1, 3).reshape(B, S, H)
    a = a @ p["out_w"].T + p["out_b"]
    x = _layernorm_ref(x + a, p["ln1_w"], p["ln1_b"])
    h = jnp.maximum(x @ p["ff1_w"].T + p["ff1_b"], 0.0) @ p["ff2_w"].T + p["ff2_b"]
    return _layernorm_ref(x + h, p["ln2_w"], p["ln2_b"])


def _forward_ref(x, params):
    y = x @ params["w_emb"].T + params["b_emb"] + params["pos_emb"][None]
    for lp in params["layers"]:
        y = _layer_ref(y, lp)
    return y


# ------------------------------- param init -------------------------------
def init_params(key):
    def nrm(k, shape, scale=0.05):
        return (scale * jax.random.normal(k, shape)).astype(jnp.float32)

    keys = jax.random.split(key, 4 + NUM_LAYERS)
    params = {
        "w_emb": nrm(keys[0], (HIDDEN, INPUT_SIZE)),
        "b_emb": nrm(keys[1], (1, HIDDEN)),
        # first SEQ rows of the (20000, HIDDEN) positional embedding table
        "pos_emb": nrm(keys[2], (SEQ, HIDDEN)),
        "layers": [],
    }
    for l in range(NUM_LAYERS):
        ks = jax.random.split(keys[4 + l], 8)
        params["layers"].append({
            "in_w": nrm(ks[0], (3 * HIDDEN, HIDDEN)),
            "in_b": nrm(ks[1], (1, 3 * HIDDEN)),
            "out_w": nrm(ks[2], (HIDDEN, HIDDEN)),
            "out_b": nrm(ks[3], (1, HIDDEN)),
            "ln1_w": jnp.ones((1, HIDDEN), jnp.float32),
            "ln1_b": jnp.zeros((1, HIDDEN), jnp.float32),
            "ff1_w": nrm(ks[4], (FFN, HIDDEN)),
            "ff1_b": nrm(ks[5], (1, FFN)),
            "ff2_w": nrm(ks[6], (HIDDEN, FFN)),
            "ff2_b": nrm(ks[7], (1, HIDDEN)),
            "ln2_w": jnp.ones((1, HIDDEN), jnp.float32),
            "ln2_b": jnp.zeros((1, HIDDEN), jnp.float32),
        })
    return params


# ---------------------------------- main ----------------------------------
if __name__ == "__main__":
    key = jax.random.PRNGKey(0)
    kx, kp = jax.random.split(key)
    x = jax.random.normal(kx, (BATCH, SEQ, INPUT_SIZE), dtype=jnp.float32)
    params = init_params(kp)

    forward = jax.jit(transformer_encoder_forward)
    out = jax.block_until_ready(forward(x, params))

    with jax.default_matmul_precision("highest"):
        ref = _forward_ref(x, params)

    assert out.shape == (BATCH, SEQ, HIDDEN)
    # Exact softmax divide restored -> tolerance bounded only by matmul
    # rounding differences between the kernel and the XLA reference.
    assert jnp.allclose(out, ref, atol=5e-3, rtol=5e-3), "mismatch vs reference"

    print("KERNEL_OK")
</pallas_src>

<mosaic_0001>
module attributes {stable_mosaic.version = 11 : i64} {
  func.func @fused_encoder_kernel(%arg0: i32, %arg1: i32, %arg2: memref<8x32xf32, #tpu.memory_space<vmem>>, %arg3: memref<1x32x96xf32, #tpu.memory_space<vmem>>, %arg4: memref<1x32x32xf32, #tpu.memory_space<vmem>>, %arg5: memref<1x32x128xf32, #tpu.memory_space<vmem>>, %arg6: memref<1x128x32xf32, #tpu.memory_space<vmem>>, %arg7: memref<1x8x128xf32, #tpu.memory_space<vmem>>, %arg8: memref<8x32xf32, #tpu.memory_space<vmem>>) attributes {dimension_semantics = [#tpu.dimension_semantics<parallel>, #tpu.dimension_semantics<arbitrary>], iteration_bounds = array<i64: 2, 2>, scalar_prefetch = 0 : i64, scratch_operands = 0 : i64, tpu.core_type = #tpu.core_type<tc>, window_params = [{transform_indices = @transform_0, window_bounds = array<i64: 8, 32>}, {transform_indices = @transform_1, window_bounds = array<i64: 1, 32, 96>}, {transform_indices = @transform_2, window_bounds = array<i64: 1, 32, 32>}, {transform_indices = @transform_3, window_bounds = array<i64: 1, 32, 128>}, {transform_indices = @transform_4, window_bounds = array<i64: 1, 128, 32>}, {transform_indices = @transform_5, window_bounds = array<i64: 1, 8, 128>}, {transform_indices = @transform_6, window_bounds = array<i64: 8, 32>}]} {
    %c0_i32 = arith.constant 0 : i32
    %0 = arith.cmpi eq, %arg1, %c0_i32 : i32
    %1 = arith.extui %0 : i1 to i32
    %c0_i32_0 = arith.constant 0 : i32
    %2 = arith.cmpi ne, %1, %c0_i32_0 : i32
    scf.if %2 {
      %c0_49 = arith.constant 0 : index
      %c0_50 = arith.constant 0 : index
      %143 = vector.load %arg2[%c0_49, %c0_50] : memref<8x32xf32, #tpu.memory_space<vmem>>, vector<8x32xf32>
      %c0_51 = arith.constant 0 : index
      %c0_52 = arith.constant 0 : index
      %144 = vector.load %arg8[%c0_51, %c0_52] : memref<8x32xf32, #tpu.memory_space<vmem>>, vector<8x32xf32>
      tpu.vector_store %arg8[%c0_51, %c0_52], %143 {strides = array<i32>} : memref<8x32xf32, #tpu.memory_space<vmem>>, vector<8x32xf32>,
    } else {
    }
    %c0 = arith.constant 0 : index
    %c0_1 = arith.constant 0 : index
    %3 = vector.load %arg8[%c0, %c0_1] : memref<8x32xf32, #tpu.memory_space<vmem>>, vector<8x32xf32>
    %c0_2 = arith.constant 0 : index
    %c0_3 = arith.constant 0 : index
    %c0_4 = arith.constant 0 : index
    %4 = vector.load %arg7[%c0_2, %c0_3, %c0_4] : memref<1x8x128xf32, #tpu.memory_space<vmem>>, vector<1x8x128xf32>
    %5 = vector.shape_cast %4 : vector<1x8x128xf32> to vector<8x128xf32>
    %6 = vector.extract_strided_slice %5 {offsets = [0, 0], sizes = [1, 96], strides = [1, 1]} : vector<8x128xf32> to vector<1x96xf32>
    %7 = vector.extract_strided_slice %5 {offsets = [1, 0], sizes = [1, 32], strides = [1, 1]} : vector<8x128xf32> to vector<1x32xf32>
    %8 = vector.extract_strided_slice %5 {offsets = [2, 0], sizes = [1, 32], strides = [1, 1]} : vector<8x128xf32> to vector<1x32xf32>
    %9 = vector.extract_strided_slice %5 {offsets = [3, 0], sizes = [1, 32], strides = [1, 1]} : vector<8x128xf32> to vector<1x32xf32>
    %10 = vector.extract_strided_slice %5 {offsets = [4, 0], sizes = [1, 128], strides = [1, 1]} : vector<8x128xf32> to vector<1x128xf32>
    %11 = vector.extract_strided_slice %5 {offsets = [5, 0], sizes = [1, 32], strides = [1, 1]} : vector<8x128xf32> to vector<1x32xf32>
    %12 = vector.extract_strided_slice %5 {offsets = [6, 0], sizes = [1, 32], strides = [1, 1]} : vector<8x128xf32> to vector<1x32xf32>
    %13 = vector.extract_strided_slice %5 {offsets = [7, 0], sizes = [1, 32], strides = [1, 1]} : vector<8x128xf32> to vector<1x32xf32>
    %c0_5 = arith.constant 0 : index
    %c0_6 = arith.constant 0 : index
    %c0_7 = arith.constant 0 : index
    %14 = vector.load %arg3[%c0_5, %c0_6, %c0_7] : memref<1x32x96xf32, #tpu.memory_space<vmem>>, vector<1x32x96xf32>
    %15 = vector.shape_cast %14 : vector<1x32x96xf32> to vector<32x96xf32>
    %cst = arith.constant dense<0.000000e+00> : vector<8x96xf32>
    %16 = tpu.matmul %3, %15, %cst {dimension_numbers = #tpu.dot_dimension_numbers<[1], [0], [0], [1], [0, 0, 1, 1], [], []>} : vector<8x32xf32>, vector<32x96xf32>, vector<8x96xf32> -> vector<8x96xf32>
    %17 = vector.broadcast %6 : vector<1x96xf32> to vector<8x96xf32>
    %18 = arith.addf %16, %17 : vector<8x96xf32>
    %19 = vector.extract_strided_slice %18 {offsets = [0, 0], sizes = [8, 32], strides = [1, 1]} : vector<8x96xf32> to vector<8x32xf32>
    %20 = vector.extract_strided_slice %18 {offsets = [0, 32], sizes = [8, 32], strides = [1, 1]} : vector<8x96xf32> to vector<8x32xf32>
    %21 = vector.extract_strided_slice %18 {offsets = [0, 64], sizes = [8, 32], strides = [1, 1]} : vector<8x96xf32> to vector<8x32xf32>
    %22 = vector.extract_strided_slice %19 {offsets = [0, 0], sizes = [8, 8], strides = [1, 1]} : vector<8x32xf32> to vector<8x8xf32>
    %23 = vector.extract_strided_slice %20 {offsets = [0, 0], sizes = [8, 8], strides = [1, 1]} : vector<8x32xf32> to vector<8x8xf32>
    %cst_8 = arith.constant dense<0.000000e+00> : vector<8x8xf32>
    %24 = tpu.matmul %22, %23, %cst_8 {dimension_numbers = #tpu.dot_dimension_numbers<[1], [1], [0], [0], [0, 0, 1, 0], [], []>} : vector<8x8xf32>, vector<8x8xf32>, vector<8x8xf32> -> vector<8x8xf32>
    %cst_9 = arith.constant dense<0xFF800000> : vector<8xf32>
    %25 = vector.multi_reduction <maximumf>, %24, %cst_9 [1] : vector<8x8xf32> to vector<8xf32>
    %26 = vector.shape_cast %25 : vector<8xf32> to vector<8x1xf32>
    %27 = vector.broadcast %26 : vector<8x1xf32> to vector<8x8xf32>
    %28 = arith.subf %24, %27 : vector<8x8xf32>
    %29 = math.exp %28 : vector<8x8xf32>
    %cst_10 = arith.constant dense<0.000000e+00> : vector<8xf32>
    %30 = vector.multi_reduction <add>, %29, %cst_10 [1] : vector<8x8xf32> to vector<8xf32>
    %31 = vector.shape_cast %30 : vector<8xf32> to vector<8x1xf32>
    %32 = vector.broadcast %31 : vector<8x1xf32> to vector<8x8xf32>
    %33 = arith.divf %29, %32 : vector<8x8xf32>
    %34 = vector.extract_strided_slice %21 {offsets = [0, 0], sizes = [8, 8], strides = [1, 1]} : vector<8x32xf32> to vector<8x8xf32>
    %cst_11 = arith.constant dense<0.000000e+00> : vector<8x8xf32>
    %35 = tpu.matmul %33, %34, %cst_11 {dimension_numbers = #tpu.dot_dimension_numbers<[1], [0], [0], [1], [0, 0, 1, 1], [], []>} : vector<8x8xf32>, vector<8x8xf32>, vector<8x8xf32> -> vector<8x8xf32>
    %36 = vector.extract_strided_slice %19 {offsets = [0, 8], sizes = [8, 8], strides = [1, 1]} : vector<8x32xf32> to vector<8x8xf32>
    %37 = vector.extract_strided_slice %20 {offsets = [0, 8], sizes = [8, 8], strides = [1, 1]} : vector<8x32xf32> to vector<8x8xf32>
    %cst_12 = arith.constant dense<0.000000e+00> : vector<8x8xf32>
    %38 = tpu.matmul %36, %37, %cst_12 {dimension_numbers = #tpu.dot_dimension_numbers<[1], [1], [0], [0], [0, 0, 1, 0], [], []>} : vector<8x8xf32>, vector<8x8xf32>, vector<8x8xf32> -> vector<8x8xf32>
    %cst_13 = arith.constant dense<0xFF800000> : vector<8xf32>
    %39 = vector.multi_reduction <maximumf>, %38, %cst_13 [1] : vector<8x8xf32> to vector<8xf32>
    %40 = vector.shape_cast %39 : vector<8xf32> to vector<8x1xf32>
    %41 = vector.broadcast %40 : vector<8x1xf32> to vector<8x8xf32>
    %42 = arith.subf %38, %41 : vector<8x8xf32>
    %43 = math.exp %42 : vector<8x8xf32>
    %cst_14 = arith.constant dense<0.000000e+00> : vector<8xf32>
    %44 = vector.multi_reduction <add>, %43, %cst_14 [1] : vector<8x8xf32> to vector<8xf32>
    %45 = vector.shape_cast %44 : vector<8xf32> to vector<8x1xf32>
    %46 = vector.broadcast %45 : vector<8x1xf32> to vector<8x8xf32>
    %47 = arith.divf %43, %46 : vector<8x8xf32>
    %48 = vector.extract_strided_slice %21 {offsets = [0, 8], sizes = [8, 8], strides = [1, 1]} : vector<8x32xf32> to vector<8x8xf32>
    %cst_15 = arith.constant dense<0.000000e+00> : vector<8x8xf32>
    %49 = tpu.matmul %47, %48, %cst_15 {dimension_numbers = #tpu.dot_dimension_numbers<[1], [0], [0], [1], [0, 0, 1, 1], [], []>} : vector<8x8xf32>, vector<8x8xf32>, vector<8x8xf32> -> vector<8x8xf32>
    %50 = vector.extract_strided_slice %19 {offsets = [0, 16], sizes = [8, 8], strides = [1, 1]} : vector<8x32xf32> to vector<8x8xf32>
    %51 = vector.extract_strided_slice %20 {offsets = [0, 16], sizes = [8, 8], strides = [1, 1]} : vector<8x32xf32> to vector<8x8xf32>
    %cst_16 = arith.constant dense<0.000000e+00> : vector<8x8xf32>
    %52 = tpu.matmul %50, %51, %cst_16 {dimension_numbers = #tpu.dot_dimension_numbers<[1], [1], [0], [0], [0, 0, 1, 0], [], []>} : vector<8x8xf32>, vector<8x8xf32>, vector<8x8xf32> -> vector<8x8xf32>
    %cst_17 = arith.constant dense<0xFF800000> : vector<8xf32>
    %53 = vector.multi_reduction <maximumf>, %52, %cst_17 [1] : vector<8x8xf32> to vector<8xf32>
    %54 = vector.shape_cast %53 : vector<8xf32> to vector<8x1xf32>
    %55 = vector.broadcast %54 : vector<8x1xf32> to vector<8x8xf32>
    %56 = arith.subf %52, %55 : vector<8x8xf32>
    %57 = math.exp %56 : vector<8x8xf32>
    %cst_18 = arith.constant dense<0.000000e+00> : vector<8xf32>
    %58 = vector.multi_reduction <add>, %57, %cst_18 [1] : vector<8x8xf32> to vector<8xf32>
    %59 = vector.shape_cast %58 : vector<8xf32> to vector<8x1xf32>
    %60 = vector.broadcast %59 : vector<8x1xf32> to vector<8x8xf32>
    %61 = arith.divf %57, %60 : vector<8x8xf32>
    %62 = vector.extract_strided_slice %21 {offsets = [0, 16], sizes = [8, 8], strides = [1, 1]} : vector<8x32xf32> to vector<8x8xf32>
    %cst_19 = arith.constant dense<0.000000e+00> : vector<8x8xf32>
    %63 = tpu.matmul %61, %62, %cst_19 {dimension_numbers = #tpu.dot_dimension_numbers<[1], [0], [0], [1], [0, 0, 1, 1], [], []>} : vector<8x8xf32>, vector<8x8xf32>, vector<8x8xf32> -> vector<8x8xf32>
    %64 = vector.extract_strided_slice %19 {offsets = [0, 24], sizes = [8, 8], strides = [1, 1]} : vector<8x32xf32> to vector<8x8xf32>
    %65 = vector.extract_strided_slice %20 {offsets = [0, 24], sizes = [8, 8], strides = [1, 1]} : vector<8x32xf32> to vector<8x8xf32>
    %cst_20 = arith.constant dense<0.000000e+00> : vector<8x8xf32>
    %66 = tpu.matmul %64, %65, %cst_20 {dimension_numbers = #tpu.dot_dimension_numbers<[1], [1], [0], [0], [0, 0, 1, 0], [], []>} : vector<8x8xf32>, vector<8x8xf32>, vector<8x8xf32> -> vector<8x8xf32>
    %cst_21 = arith.constant dense<0xFF800000> : vector<8xf32>
    %67 = vector.multi_reduction <maximumf>, %66, %cst_21 [1] : vector<8x8xf32> to vector<8xf32>
    %68 = vector.shape_cast %67 : vector<8xf32> to vector<8x1xf32>
    %69 = vector.broadcast %68 : vector<8x1xf32> to vector<8x8xf32>
    %70 = arith.subf %66, %69 : vector<8x8xf32>
    %71 = math.exp %70 : vector<8x8xf32>
    %cst_22 = arith.constant dense<0.000000e+00> : vector<8xf32>
    %72 = vector.multi_reduction <add>, %71, %cst_22 [1] : vector<8x8xf32> to vector<8xf32>
    %73 = vector.shape_cast %72 : vector<8xf32> to vector<8x1xf32>
    %74 = vector.broadcast %73 : vector<8x1xf32> to vector<8x8xf32>
    %75 = arith.divf %71, %74 : vector<8x8xf32>
    %76 = vector.extract_strided_slice %21 {offsets = [0, 24], sizes = [8, 8], strides = [1, 1]} : vector<8x32xf32> to vector<8x8xf32>
    %cst_23 = arith.constant dense<0.000000e+00> : vector<8x8xf32>
    %77 = tpu.matmul %75, %76, %cst_23 {dimension_numbers = #tpu.dot_dimension_numbers<[1], [0], [0], [1], [0, 0, 1, 1], [], []>} : vector<8x8xf32>, vector<8x8xf32>, vector<8x8xf32> -> vector<8x8xf32>
    %78 = tpu.concatenate %35, %49, %63, %77 in 1 : vector<8x8xf32>, vector<8x8xf32>, vector<8x8xf32>, vector<8x8xf32> -> vector<8x32xf32>
    %c0_24 = arith.constant 0 : index
    %c0_25 = arith.constant 0 : index
    %c0_26 = arith.constant 0 : index
    %79 = vector.load %arg4[%c0_24, %c0_25, %c0_26] : memref<1x32x32xf32, #tpu.memory_space<vmem>>, vector<1x32x32xf32>
    %80 = vector.shape_cast %79 : vector<1x32x32xf32> to vector<32x32xf32>
    %cst_27 = arith.constant dense<0.000000e+00> : vector<8x32xf32>
    %81 = tpu.matmul %78, %80, %cst_27 {dimension_numbers = #tpu.dot_dimension_numbers<[1], [0], [0], [1], [0, 0, 1, 1], [], []>} : vector<8x32xf32>, vector<32x32xf32>, vector<8x32xf32> -> vector<8x32xf32>
    %82 = vector.broadcast %7 : vector<1x32xf32> to vector<8x32xf32>
    %83 = arith.addf %81, %82 : vector<8x32xf32>
    %84 = arith.addf %3, %83 : vector<8x32xf32>
    %cst_28 = arith.constant dense<0.000000e+00> : vector<8xf32>
    %85 = vector.multi_reduction <add>, %84, %cst_28 [1] : vector<8x32xf32> to vector<8xf32>
    %86 = vector.shape_cast %85 : vector<8xf32> to vector<8x1xf32>
    %cst_29 = arith.constant 3.200000e+01 : f32
    %87 = vector.broadcast %cst_29 : f32 to vector<8x1xf32>
    %88 = arith.divf %86, %87 : vector<8x1xf32>
    %89 = vector.broadcast %88 : vector<8x1xf32> to vector<8x32xf32>
    %90 = arith.subf %84, %89 : vector<8x32xf32>
    %91 = arith.mulf %90, %90 : vector<8x32xf32>
    %cst_30 = arith.constant dense<0.000000e+00> : vector<8xf32>
    %92 = vector.multi_reduction <add>, %91, %cst_30 [1] : vector<8x32xf32> to vector<8xf32>
    %93 = vector.shape_cast %92 : vector<8xf32> to vector<8x1xf32>
    %cst_31 = arith.constant 3.200000e+01 : f32
    %94 = vector.broadcast %cst_31 : f32 to vector<8x1xf32>
    %95 = arith.divf %93, %94 : vector<8x1xf32>
    %96 = vector.broadcast %88 : vector<8x1xf32> to vector<8x32xf32>
    %97 = arith.subf %84, %96 : vector<8x32xf32>
    %cst_32 = arith.constant 9.99999974E-6 : f32
    %98 = vector.broadcast %cst_32 : f32 to vector<8x1xf32>
    %99 = arith.addf %95, %98 : vector<8x1xf32>
    %100 = math.rsqrt %99 : vector<8x1xf32>
    %101 = vector.broadcast %100 : vector<8x1xf32> to vector<8x32xf32>
    %102 = arith.mulf %97, %101 : vector<8x32xf32>
    %103 = vector.broadcast %8 : vector<1x32xf32> to vector<8x32xf32>
    %104 = arith.mulf %102, %103 : vector<8x32xf32>
    %105 = vector.broadcast %9 : vector<1x32xf32> to vector<8x32xf32>
    %106 = arith.addf %104, %105 : vector<8x32xf32>
    %c0_33 = arith.constant 0 : index
    %c0_34 = arith.constant 0 : index
    %c0_35 = arith.constant 0 : index
    %107 = vector.load %arg5[%c0_33, %c0_34, %c0_35] : memref<1x32x128xf32, #tpu.memory_space<vmem>>, vector<1x32x128xf32>
    %108 = vector.shape_cast %107 : vector<1x32x128xf32> to vector<32x128xf32>
    %cst_36 = arith.constant dense<0.000000e+00> : vector<8x128xf32>
    %109 = tpu.matmul %106, %108, %cst_36 {dimension_numbers = #tpu.dot_dimension_numbers<[1], [0], [0], [1], [0, 0, 1, 1], [], []>} : vector<8x32xf32>, vector<32x128xf32>, vector<8x128xf32> -> vector<8x128xf32>
    %110 = vector.broadcast %10 : vector<1x128xf32> to vector<8x128xf32>
    %111 = arith.addf %109, %110 : vector<8x128xf32>
    %cst_37 = arith.constant 0.000000e+00 : f32
    %112 = vector.broadcast %cst_37 : f32 to vector<8x128xf32>
    %113 = arith.maximumf %111, %112 : vector<8x128xf32>
    %c0_38 = arith.constant 0 : index
    %c0_39 = arith.constant 0 : index
    %c0_40 = arith.constant 0 : index
    %114 = vector.load %arg6[%c0_38, %c0_39, %c0_40] : memref<1x128x32xf32, #tpu.memory_space<vmem>>, vector<1x128x32xf32>
    %115 = vector.shape_cast %114 : vector<1x128x32xf32> to vector<128x32xf32>
    %cst_41 = arith.constant dense<0.000000e+00> : vector<8x32xf32>
    %116 = tpu.matmul %113, %115, %cst_41 {dimension_numbers = #tpu.dot_dimension_numbers<[1], [0], [0], [1], [0, 0, 1, 1], [], []>} : vector<8x128xf32>, vector<128x32xf32>, vector<8x32xf32> -> vector<8x32xf32>
    %117 = vector.broadcast %11 : vector<1x32xf32> to vector<8x32xf32>
    %118 = arith.addf %116, %117 : vector<8x32xf32>
    %119 = arith.addf %106, %118 : vector<8x32xf32>
    %cst_42 = arith.constant dense<0.000000e+00> : vector<8xf32>
    %120 = vector.multi_reduction <add>, %119, %cst_42 [1] : vector<8x32xf32> to vector<8xf32>
    %121 = vector.shape_cast %120 : vector<8xf32> to vector<8x1xf32>
    %cst_43 = arith.constant 3.200000e+01 : f32
    %122 = vector.broadcast %cst_43 : f32 to vector<8x1xf32>
    %123 = arith.divf %121, %122 : vector<8x1xf32>
    %124 = vector.broadcast %123 : vector<8x1xf32> to vector<8x32xf32>
    %125 = arith.subf %119, %124 : vector<8x32xf32>
    %126 = arith.mulf %125, %125 : vector<8x32xf32>
    %cst_44 = arith.constant dense<0.000000e+00> : vector<8xf32>
    %127 = vector.multi_reduction <add>, %126, %cst_44 [1] : vector<8x32xf32> to vector<8xf32>
    %128 = vector.shape_cast %127 : vector<8xf32> to vector<8x1xf32>
    %cst_45 = arith.constant 3.200000e+01 : f32
    %129 = vector.broadcast %cst_45 : f32 to vector<8x1xf32>
    %130 = arith.divf %128, %129 : vector<8x1xf32>
    %131 = vector.broadcast %123 : vector<8x1xf32> to vector<8x32xf32>
    %132 = arith.subf %119, %131 : vector<8x32xf32>
    %cst_46 = arith.constant 9.99999974E-6 : f32
    %133 = vector.broadcast %cst_46 : f32 to vector<8x1xf32>
    %134 = arith.addf %130, %133 : vector<8x1xf32>
    %135 = math.rsqrt %134 : vector<8x1xf32>
    %136 = vector.broadcast %135 : vector<8x1xf32> to vector<8x32xf32>
    %137 = arith.mulf %132, %136 : vector<8x32xf32>
    %138 = vector.broadcast %12 : vector<1x32xf32> to vector<8x32xf32>
    %139 = arith.mulf %137, %138 : vector<8x32xf32>
    %140 = vector.broadcast %13 : vector<1x32xf32> to vector<8x32xf32>
    %141 = arith.addf %139, %140 : vector<8x32xf32>
    %c0_47 = arith.constant 0 : index
    %c0_48 = arith.constant 0 : index
    %142 = vector.load %arg8[%c0_47, %c0_48] : memref<8x32xf32, #tpu.memory_space<vmem>>, vector<8x32xf32>
    tpu.vector_store %arg8[%c0_47, %c0_48], %141 {strides = array<i32>} : memref<8x32xf32, #tpu.memory_space<vmem>>, vector<8x32xf32>,
    return
  }
  func.func @transform_0(%arg0: i32, %arg1: i32) -> (i32, i32) {
    %c0_i32 = arith.constant 0 : i32
    %c0_i32_0 = arith.constant 0 : i32
    return %arg0, %c0_i32 : i32, i32
  }
  func.func @transform_1(%arg0: i32, %arg1: i32) -> (i32, i32, i32) {
    %c0_i32 = arith.constant 0 : i32
    %c0_i32_0 = arith.constant 0 : i32
    %c0_i32_1 = arith.constant 0 : i32
    return %arg1, %c0_i32, %c0_i32_0 : i32, i32, i32
  }
  func.func @transform_2(%arg0: i32, %arg1: i32) -> (i32, i32, i32) {
    %c0_i32 = arith.constant 0 : i32
    %c0_i32_0 = arith.constant 0 : i32
    %c0_i32_1 = arith.constant 0 : i32
    return %arg1, %c0_i32, %c0_i32_0 : i32, i32, i32
  }
  func.func @transform_3(%arg0: i32, %arg1: i32) -> (i32, i32, i32) {
    %c0_i32 = arith.constant 0 : i32
    %c0_i32_0 = arith.constant 0 : i32
    %c0_i32_1 = arith.constant 0 : i32
    return %arg1, %c0_i32, %c0_i32_0 : i32, i32, i32
  }
  func.func @transform_4(%arg0: i32, %arg1: i32) -> (i32, i32, i32) {
    %c0_i32 = arith.constant 0 : i32
    %c0_i32_0 = arith.constant 0 : i32
    %c0_i32_1 = arith.constant 0 : i32
    return %arg1, %c0_i32, %c0_i32_0 : i32, i32, i32
  }
  func.func @transform_5(%arg0: i32, %arg1: i32) -> (i32, i32, i32) {
    %c0_i32 = arith.constant 0 : i32
    %c0_i32_0 = arith.constant 0 : i32
    %c0_i32_1 = arith.constant 0 : i32
    return %arg1, %c0_i32, %c0_i32_0 : i32, i32, i32
  }
  func.func @transform_6(%arg0: i32, %arg1: i32) -> (i32, i32) {
    %c0_i32 = arith.constant 0 : i32
    %c0_i32_0 = arith.constant 0 : i32
    return %arg0, %c0_i32 : i32, i32
  }
}

</mosaic_0001>

<llo_original>
// kernel: transformer_encoder_forward.1
$region0: #{transformer_encoder_forward.1}
  #allocation0 [shape = 'u32[]', space=smem, size = 0x4, offset = 0x4, fixed_abs, tag = 'smem constant byte address 0x4 - core index']
  #allocation1 [shape = 'u32[144,128]{1,0:T(1,128)}', space=vmem, size = 0x12000, scoped, tag = 'internal scratch']
  %s0 = inlined_call_operand.vmem [shape: f32[16,32], index: 0, kind: input, shape index: {}, may-alias: {0,6}]
  %s1 = inlined_call_operand.vmem [shape: f32[2,32,96], index: 1, kind: input, shape index: {}]
  %s2 = inlined_call_operand.vmem [shape: f32[2,32,32], index: 2, kind: input, shape index: {}]
  %s3 = inlined_call_operand.vmem [shape: f32[2,32,128], index: 3, kind: input, shape index: {}]
  %s4 = inlined_call_operand.vmem [shape: f32[2,128,32], index: 4, kind: input, shape index: {}]
  %s5 = inlined_call_operand.vmem [shape: f32[2,8,128], index: 5, kind: input, shape index: {}]
  %s6 = inlined_call_operand.vmem [shape: f32[16,32], index: 6, kind: output, shape index: {}, may-alias: {0,6}]
  %s7 = sld [smem:[#allocation0]]
  $region61: #{transformer_encoder_forward.1} parent=0
    _
  %s9 = ssub.s32 1, %s7
  %s10 = scalar_select 0, %s9, %s7
  loop: start=0, step=1, limit=6
  $region2: #{transformer_encoder_forward.1} parent=0 // loop_pre_header
    _
  $region3: #{transformer_encoder_forward.1} parent=0 // loop_header
    %s12 = sphi 0, %s16
    %p13 = scmp.ge.s32.totalorder %s12, 6
    %s19 = sphi 0, %s31
    %s20 = sphi 0, %s27
    %s21 = sphi 0, %s19
    %s22 = sphi 0, %s20
    %s23 = sphi 0, %s21
    %s24 = sphi 0, %s22
    %s34 = sphi 0, %s36
    %s37 = sphi 0, %s34
    %s38 = sphi 0, %s37
    %s54 = sphi 0, %s38
    %s60 = sphi 0, %s62
    %s63 = sphi 0, %s60
    %s64 = sphi 0, %s63
    %s80 = sphi 0, %s64
    %s86 = sphi 0, %s88
    %s89 = sphi 0, %s86
    %s90 = sphi 0, %s89
    %s106 = sphi 0, %s90
    %s112 = sphi 0, %s114
    %s115 = sphi 0, %s112
    %s116 = sphi 0, %s115
    %s132 = sphi 0, %s116
    %s138 = sphi 0, %s140
    %s141 = sphi 0, %s138
    %s142 = sphi 0, %s141
    %s158 = sphi 0, %s142
    %s164 = sphi 0, %s166
    %s167 = sphi 0, %s164
    %s168 = sphi 0, %s167
    %s184 = sphi 0, %s168
    %s190 = sphi 0, %s192
    %s193 = sphi 0, %s190
    %s194 = sphi 0, %s193
    %s210 = sphi 0, %s194
  $region4: #{transformer_encoder_forward.1} parent=0 // loop_header_branch
    %15 = sbr.rel (%p13) target = $region8
  $region5: #{transformer_encoder_forward.1} parent=0 // loop_body
    %s17 = ssub.s32 %s12, 1
    %s18 = ssub.s32 %s12, 2
    %s25 = sadd.s32 1, %s20
    %p26 = scmp.ge.s32.totalorder %s25, 2
    %s27 = scalar_select %p26, 0, %s25
    %s28 = sadd.s32 1, %s19
    %s29 = scalar_select %p26, %s28, %s19
    %p30 = scmp.ge.s32.totalorder %s29, 2
    %s31 = scalar_select %p30, 0, %s29
    %s32 = ssub.s32 %s19, %s31
    %p33 = scmp.eq.s32.totalorder %s32, 0
    %s35 = sadd.s32 %s34, 1
    %s36 = scalar_select %p33, %s34, %s35
    %p39 = pneg %p33
    %p40 = scmp.eq.s32.totalorder %s12, 3
    %p41 = por %p39, %p40
    %p42 = scmp.ne.s32.totalorder %s34, %s37
    %p43 = scmp.eq.s32.totalorder %s12, 0
    %p44 = por %p42, %p43
    %p45 = scmp.ne.s32.totalorder %s34, %s37
    %p46 = scmp.eq.s32.totalorder %s17, 3
    %p47 = por %p45, %p46
    %p48 = scmp.ne.s32.totalorder %s37, %s38
    %p49 = scmp.eq.s32.totalorder %s17, 0
    %p50 = por %p48, %p49
    %p51 = scmp.ne.s32.totalorder %s37, %s38
    %p52 = scmp.eq.s32.totalorder %s18, 3
    %p53 = por %p51, %p52
    %p55 = scmp.ne.s32.totalorder %s38, %s54
    %p56 = scmp.eq.s32.totalorder %s18, 0
    %p57 = por %p55, %p56
    %s58 = ssub.s32 %s20, %s27
    %p59 = scmp.eq.s32.totalorder %s58, 0
    %s61 = sadd.s32 %s60, 1
    %s62 = scalar_select %p59, %s60, %s61
    %p65 = pneg %p59
    %p66 = scmp.eq.s32.totalorder %s12, 3
    %p67 = por %p65, %p66
    %p68 = scmp.ne.s32.totalorder %s60, %s63
    %p69 = scmp.eq.s32.totalorder %s12, 0
    %p70 = por %p68, %p69
    %p71 = scmp.ne.s32.totalorder %s60, %s63
    %p72 = scmp.eq.s32.totalorder %s17, 3
    %p73 = por %p71, %p72
    %p74 = scmp.ne.s32.totalorder %s63, %s64
    %p75 = scmp.eq.s32.totalorder %s17, 0
    %p76 = por %p74, %p75
    %p77 = scmp.ne.s32.totalorder %s63, %s64
    %p78 = scmp.eq.s32.totalorder %s18, 3
    %p79 = por %p77, %p78
    %p81 = scmp.ne.s32.totalorder %s64, %s80
    %p82 = scmp.eq.s32.totalorder %s18, 0
    %p83 = por %p81, %p82
    %s84 = ssub.s32 %s20, %s27
    %p85 = scmp.eq.s32.totalorder %s84, 0
    %s87 = sadd.s32 %s86, 1
    %s88 = scalar_select %p85, %s86, %s87
    %p91 = pneg %p85
    %p92 = scmp.eq.s32.totalorder %s12, 3
    %p93 = por %p91, %p92
    %p94 = scmp.ne.s32.totalorder %s86, %s89
    %p95 = scmp.eq.s32.totalorder %s12, 0
    %p96 = por %p94, %p95
    %p97 = scmp.ne.s32.totalorder %s86, %s89
    %p98 = scmp.eq.s32.totalorder %s17, 3
    %p99 = por %p97, %p98
    %p100 = scmp.ne.s32.totalorder %s89, %s90
    %p101 = scmp.eq.s32.totalorder %s17, 0
    %p102 = por %p100, %p101
    %p103 = scmp.ne.s32.totalorder %s89, %s90
    %p104 = scmp.eq.s32.totalorder %s18, 3
    %p105 = por %p103, %p104
    %p107 = scmp.ne.s32.totalorder %s90, %s106
    %p108 = scmp.eq.s32.totalorder %s18, 0
    %p109 = por %p107, %p108
    %s110 = ssub.s32 %s20, %s27
    %p111 = scmp.eq.s32.totalorder %s110, 0
    %s113 = sadd.s32 %s112, 1
    %s114 = scalar_select %p111, %s112, %s113
    %p117 = pneg %p111
    %p118 = scmp.eq.s32.totalorder %s12, 3
    %p119 = por %p117, %p118
    %p120 = scmp.ne.s32.totalorder %s112, %s115
    %p121 = scmp.eq.s32.totalorder %s12, 0
    %p122 = por %p120, %p121
    %p123 = scmp.ne.s32.totalorder %s112, %s115
    %p124 = scmp.eq.s32.totalorder %s17, 3
    %p125 = por %p123, %p124
    %p126 = scmp.ne.s32.totalorder %s115, %s116
    %p127 = scmp.eq.s32.totalorder %s17, 0
    %p128 = por %p126, %p127
    %p129 = scmp.ne.s32.totalorder %s115, %s116
    %p130 = scmp.eq.s32.totalorder %s18, 3
    %p131 = por %p129, %p130
    %p133 = scmp.ne.s32.totalorder %s116, %s132
    %p134 = scmp.eq.s32.totalorder %s18, 0
    %p135 = por %p133, %p134
    %s136 = ssub.s32 %s20, %s27
    %p137 = scmp.eq.s32.totalorder %s136, 0
    %s139 = sadd.s32 %s138, 1
    %s140 = scalar_select %p137, %s138, %s139
    %p143 = pneg %p137
    %p144 = scmp.eq.s32.totalorder %s12, 3
    %p145 = por %p143, %p144
    %p146 = scmp.ne.s32.totalorder %s138, %s141
    %p147 = scmp.eq.s32.totalorder %s12, 0
    %p148 = por %p146, %p147
    %p149 = scmp.ne.s32.totalorder %s138, %s141
    %p150 = scmp.eq.s32.totalorder %s17, 3
    %p151 = por %p149, %p150
    %p152 = scmp.ne.s32.totalorder %s141, %s142
    %p153 = scmp.eq.s32.totalorder %s17, 0
    %p154 = por %p152, %p153
    %p155 = scmp.ne.s32.totalorder %s141, %s142
    %p156 = scmp.eq.s32.totalorder %s18, 3
    %p157 = por %p155, %p156
    %p159 = scmp.ne.s32.totalorder %s142, %s158
    %p160 = scmp.eq.s32.totalorder %s18, 0
    %p161 = por %p159, %p160
    %s162 = ssub.s32 %s20, %s27
    %p163 = scmp.eq.s32.totalorder %s162, 0
    %s165 = sadd.s32 %s164, 1
    %s166 = scalar_select %p163, %s164, %s165
    %p169 = pneg %p163
    %p170 = scmp.eq.s32.totalorder %s12, 3
    %p171 = por %p169, %p170
    %p172 = scmp.ne.s32.totalorder %s164, %s167
    %p173 = scmp.eq.s32.totalorder %s12, 0
    %p174 = por %p172, %p173
    %p175 = scmp.ne.s32.totalorder %s164, %s167
    %p176 = scmp.eq.s32.totalorder %s17, 3
    %p177 = por %p175, %p176
    %p178 = scmp.ne.s32.totalorder %s167, %s168
    %p179 = scmp.eq.s32.totalorder %s17, 0
    %p180 = por %p178, %p179
    %p181 = scmp.ne.s32.totalorder %s167, %s168
    %p182 = scmp.eq.s32.totalorder %s18, 3
    %p183 = por %p181, %p182
    %p185 = scmp.ne.s32.totalorder %s168, %s184
    %p186 = scmp.eq.s32.totalorder %s18, 0
    %p187 = por %p185, %p186
    %s188 = ssub.s32 %s19, %s31
    %p189 = scmp.eq.s32.totalorder %s188, 0
    %s191 = sadd.s32 %s190, 1
    %s192 = scalar_select %p189, %s190, %s191
    %p195 = pneg %p189
    %p196 = scmp.eq.s32.totalorder %s12, 3
    %p197 = por %p195, %p196
    %p198 = scmp.ne.s32.totalorder %s190, %s193
    %p199 = scmp.eq.s32.totalorder %s12, 0
    %p200 = por %p198, %p199
    %p201 = scmp.ne.s32.totalorder %s190, %s193
    %p202 = scmp.eq.s32.totalorder %s17, 3
    %p203 = por %p201, %p202
    %p204 = scmp.ne.s32.totalorder %s193, %s194
    %p205 = scmp.eq.s32.totalorder %s17, 0
    %p206 = por %p204, %p205
    %p207 = scmp.ne.s32.totalorder %s193, %s194
    %p208 = scmp.eq.s32.totalorder %s18, 3
    %p209 = por %p207, %p208
    %p211 = scmp.ne.s32.totalorder %s194, %s210
    %p212 = scmp.eq.s32.totalorder %s18, 0
    %p213 = por %p211, %p212
    %p214 = scmp.le.s32.totalorder 1, %s12
    %p215 = scmp.lt.s32.totalorder %s12, 5
    %p216 = pnand %p214, %p215
    %p217 = pneg %p216
    // Predicated region
    $region9: #{transformer_encoder_forward.1} parent=5 // pred_check
      _
    $region10: #{transformer_encoder_forward.1} parent=5 // pred_check_branch
      %219 = sbr.rel (%p216) target = $region12
    $region11: #{transformer_encoder_forward.1} parent=5 // pred_region
      %s220 = ssub.s32 %s12, 1
    $region12: #{transformer_encoder_forward.1} parent=5 // pred_fallthru
      _
    %p221 = scmp.lt.s32.totalorder %s12, 4
    // Predicated region
    $region13: #{transformer_encoder_forward.1} parent=5 // pred_check
      %p222 = pneg %p221
    $region14: #{transformer_encoder_forward.1} parent=5 // pred_check_branch
      %224 = sbr.rel (%p222) target = $region16
    $region15: #{transformer_encoder_forward.1} parent=5 // pred_region
      // Predicated region
      $region17: #{transformer_encoder_forward.1} parent=15 // pred_check
        %p225 = pneg %p44
      $region18: #{transformer_encoder_forward.1} parent=15 // pred_check_branch
        %227 = sbr.rel (%p225) target = $region20
      $region19: #{transformer_encoder_forward.1} parent=15 // pred_region
        %p228 = scmp.lt.s32.totalorder %s19, 1
        %s229 = scalar_select %p228, %s19, 1
        %s230 = smul.addr %s229, 8
        %s231 = scalar_lea.vmem %s0, %s230
      $region20: #{transformer_encoder_forward.1} parent=15 // pred_fallthru
        _
      // Predicated region
      $region21: #{transformer_encoder_forward.1} parent=15 // pred_check
        %p232 = pneg %p70
      $region22: #{transformer_encoder_forward.1} parent=15 // pred_check_branch
        %234 = sbr.rel (%p232) target = $region24
      $region23: #{transformer_encoder_forward.1} parent=15 // pred_region
        %p235 = scmp.lt.s32.totalorder %s20, 1
        %s236 = scalar_select %p235, %s20, 1
        %s237 = smul.addr %s236, 4
        %s238 = smul.addr %s237, 8
        %s239 = scalar_lea.vmem %s1, %s238
      $region24: #{transformer_encoder_forward.1} parent=15 // pred_fallthru
        _
      // Predicated region
      $region25: #{transformer_encoder_forward.1} parent=15 // pred_check
        %p240 = pneg %p96
      $region26: #{transformer_encoder_forward.1} parent=15 // pred_check_branch
        %242 = sbr.rel (%p240) target = $region28
      $region27: #{transformer_encoder_forward.1} parent=15 // pred_region
        %p243 = scmp.lt.s32.totalorder %s20, 1
        %s244 = scalar_select %p243, %s20, 1
        %s245 = smul.addr %s244, 4
        %s246 = smul.addr %s245, 8
        %s247 = scalar_lea.vmem %s2, %s246
      $region28: #{transformer_encoder_forward.1} parent=15 // pred_fallthru
        _
      // Predicated region
      $region29: #{transformer_encoder_forward.1} parent=15 // pred_check
        %p248 = pneg %p122
      $region30: #{transformer_encoder_forward.1} parent=15 // pred_check_branch
        %250 = sbr.rel (%p248) target = $region32
      $region31: #{transformer_encoder_forward.1} parent=15 // pred_region
        %p251 = scmp.lt.s32.totalorder %s20, 1
        %s252 = scalar_select %p251, %s20, 1
        %s253 = smul.addr %s252, 4
        %s254 = smul.addr %s253, 8
        %s255 = scalar_lea.vmem %s3, %s254
      $region32: #{transformer_encoder_forward.1} parent=15 // pred_fallthru
        _
      // Predicated region
      $region33: #{transformer_encoder_forward.1} parent=15 // pred_check
        %p256 = pneg %p148
      $region34: #{transformer_encoder_forward.1} parent=15 // pred_check_branch
        %258 = sbr.rel (%p256) target = $region36
      $region35: #{transformer_encoder_forward.1} parent=15 // pred_region
        %p259 = scmp.lt.s32.totalorder %s20, 1
        %s260 = scalar_select %p259, %s20, 1
        %s261 = smul.addr %s260, 16
        %s262 = smul.addr %s261, 8
        %s263 = scalar_lea.vmem %s4, %s262
      $region36: #{transformer_encoder_forward.1} parent=15 // pred_fallthru
        _
      // Predicated region
      $region37: #{transformer_encoder_forward.1} parent=15 // pred_check
        %p264 = pneg %p174
      $region38: #{transformer_encoder_forward.1} parent=15 // pred_check_branch
        %266 = sbr.rel (%p264) target = $region40
      $region39: #{transformer_encoder_forward.1} parent=15 // pred_region
        %p267 = scmp.lt.s32.totalorder %s20, 1
        %s268 = scalar_select %p267, %s20, 1
        %s269 = smul.addr %s268, 8
        %s270 = scalar_lea.vmem %s5, %s269
      $region40: #{transformer_encoder_forward.1} parent=15 // pred_fallthru
        _
    $region16: #{transformer_encoder_forward.1} parent=5 // pred_fallthru
      _
    %p271 = scmp.le.s32.totalorder 1, %s12
    %p272 = scmp.lt.s32.totalorder %s12, 5
    %p273 = pnand %p271, %p272
    %p274 = pneg %p273
    // Predicated region
    $region41: #{transformer_encoder_forward.1} parent=5 // pred_check
      _
    $region42: #{transformer_encoder_forward.1} parent=5 // pred_check_branch
      %276 = sbr.rel (%p273) target = $region44
    $region43: #{transformer_encoder_forward.1} parent=5 // pred_region
      %s277 = ssub.s32 %s12, 1
      %p278 = scmp.lt.s32.totalorder %s21, 1
      %s279 = scalar_select %p278, %s21, 1
      %s280 = smul.addr %s279, 8
      %s281 = scalar_lea.vmem %s0, %s280
      %p282 = pneg %p50
      %p283 = pneg %p47
      %p284 = scmp.lt.s32.totalorder %s22, 1
      %s285 = scalar_select %p284, %s22, 1
      %s286 = smul.addr %s285, 4
      %s287 = smul.addr %s286, 8
      %s288 = scalar_lea.vmem %s1, %s287
      %p289 = pneg %p76
      %p290 = pneg %p73
      %p291 = scmp.lt.s32.totalorder %s22, 1
      %s292 = scalar_select %p291, %s22, 1
      %s293 = smul.addr %s292, 4
      %s294 = smul.addr %s293, 8
      %s295 = scalar_lea.vmem %s2, %s294
      %p296 = pneg %p102
      %p297 = pneg %p99
      %p298 = scmp.lt.s32.totalorder %s22, 1
      %s299 = scalar_select %p298, %s22, 1
      %s300 = smul.addr %s299, 4
      %s301 = smul.addr %s300, 8
      %s302 = scalar_lea.vmem %s3, %s301
      %p303 = pneg %p128
      %p304 = pneg %p125
      %p305 = scmp.lt.s32.totalorder %s22, 1
      %s306 = scalar_select %p305, %s22, 1
      %s307 = smul.addr %s306, 16
      %s308 = smul.addr %s307, 8
      %s309 = scalar_lea.vmem %s4, %s308
      %p310 = pneg %p154
      %p311 = pneg %p151
      %p312 = scmp.lt.s32.totalorder %s22, 1
      %s313 = scalar_select %p312, %s22, 1
      %s314 = smul.addr %s313, 8
      %s315 = scalar_lea.vmem %s5, %s314
      %p316 = pneg %p180
      %p317 = pneg %p177
      %p318 = pneg %p206
      %p319 = pneg %p203
      %p320 = scmp.lt.s32.totalorder %s21, 1
      %s321 = scalar_select %p320, %s21, 1
      %s322 = smul.addr %s321, 8
      %s323 = scalar_lea.vmem %s6, %s322
      %p324 = scmp.lt.s32.totalorder %s21, 1
      %s325 = scalar_select %p324, %s21, 1
      %s326 = smul.addr %s325, 8
      %s327 = scalar_lea.vmem %s0, %s326
      %p328 = scmp.lt.s32.totalorder %s22, 1
      %s329 = scalar_select %p328, %s22, 1
      %s330 = smul.addr %s329, 4
      %s331 = smul.addr %s330, 8
      %s332 = scalar_lea.vmem %s1, %s331
      %p333 = scmp.lt.s32.totalorder %s22, 1
      %s334 = scalar_select %p333, %s22, 1
      %s335 = smul.addr %s334, 4
      %s336 = smul.addr %s335, 8
      %s337 = scalar_lea.vmem %s2, %s336
      %p338 = scmp.lt.s32.totalorder %s22, 1
      %s339 = scalar_select %p338, %s22, 1
      %s340 = smul.addr %s339, 4
      %s341 = smul.addr %s340, 8
      %s342 = scalar_lea.vmem %s3, %s341
      %p343 = scmp.lt.s32.totalorder %s22, 1
      %s344 = scalar_select %p343, %s22, 1
      %s345 = smul.addr %s344, 16
      %s346 = smul.addr %s345, 8
      %s347 = scalar_lea.vmem %s4, %s346
      %p348 = scmp.lt.s32.totalorder %s22, 1
      %s349 = scalar_select %p348, %s22, 1
      %s350 = smul.addr %s349, 8
      %s351 = scalar_lea.vmem %s5, %s350
      %p352 = scmp.lt.s32.totalorder %s21, 1
      %s353 = scalar_select %p352, %s21, 1
      %s354 = smul.addr %s353, 8
      %s355 = scalar_lea.vmem %s6, %s354
      %p356 = scmp.eq.s32.totalorder %s22, 0
      // Predicated region
      $region45: #{transformer_encoder_forward.1} parent=43 // pred_check
        %p357 = pneg %p356
      $region46: #{transformer_encoder_forward.1} parent=43 // pred_check_branch
        %359 = sbr.rel (%p357) target = $region48
      $region47: #{transformer_encoder_forward.1} parent=43 // pred_region
        %v360 = vld [vmem:[%s327] sm:$0xff]
        %vm361 = vcmask 261120
        %362 = vst.msk [vmem:[%s355] sm:$0xff] %vm361, %v360
      $region48: #{transformer_encoder_forward.1} parent=43 // pred_fallthru
        _
      %v363 = vld [vmem:[%s355] sm:$0xff]
      %v364 = vld [vmem:[%s351] sm:$0xff]
      %v365 = vld [vmem:[%s332] sm:$0xff]
      %v366 = vld [vmem:[%s332 + $0x8] sm:$0xff]
      %v367 = vld [vmem:[%s332 + $0x10] sm:$0xff]
      %v368 = vld [vmem:[%s332 + $0x18] sm:$0xff]
      %v369 = vlaneseq
      %v370 = vshrl.u32 %v369, 7
      %v371 = vsub.s32 0, %v370
      %v372 = vrot.slane %v364, %v371
      %vm373 = vcmask 261120
      %v375 = vsel %vm373, %v363, 0
      %377 = vmatprep.subr.mxu0 0.0
      %378 = vmatpush1.msra.mxu0 %v365
      %379 = vmatprep.subr.mxu0 0.0
      %380 = vmatpush1.msra.mxu0 %v366
      %381 = vmatprep.subr.mxu0 0.0
      %382 = vmatpush1.msra.mxu0 %v367
      %383 = vmatprep.subr.mxu0 0.0
      %384 = vmatpush1.msra.mxu0 %v368
      %385 = vmatprep.subr.mxu0 0.0
      %386 = vmatpush1.msra.mxu0 0.0
      %387 = vmatprep.subr.mxu0 0.0
      %388 = vmatpush1.msra.mxu0 0.0
      %389 = vmatprep.subr.mxu0 0.0
      %390 = vmatpush1.msra.mxu0 0.0
      %391 = vmatprep.subr.mxu0 0.0
      %392 = vmatpush1.msra.mxu0 0.0
      %393 = vmatprep.subr.mxu0 0.0
      %394 = vmatpush1.msra.mxu0 0.0
      %395 = vmatprep.subr.mxu0 0.0
      %396 = vmatpush1.msra.mxu0 0.0
      %397 = vmatprep.subr.mxu0 0.0
      %398 = vmatpush1.msra.mxu0 0.0
      %399 = vmatprep.subr.mxu0 0.0
      %400 = vmatpush1.msra.mxu0 0.0
      %401 = vmatprep.subr.mxu0 0.0
      %402 = vmatpush1.msra.mxu0 0.0
      %403 = vmatprep.subr.mxu0 0.0
      %404 = vmatpush1.msra.mxu0 0.0
      %405 = vmatprep.subr.mxu0 0.0
      %406 = vmatpush1.msra.mxu0 0.0
      %407 = vmatprep.subr.mxu0 0.0
      %408 = vmatpush1.msra.mxu0 0.0
      %409 = vmatprep.subr.mxu0 0.0
      %410 = vmatpush1.msra.mxu0 0.0
      %411 = vmatprep.subr.mxu0 0.0
      %412 = vmatpush1.msra.mxu0 0.0
      %413 = vmatprep.subr.mxu0 0.0
      %414 = vmatpush1.msra.mxu0 0.0
      %415 = vmatprep.subr.mxu0 0.0
      %416 = vmatpush1.msra.mxu0 0.0
      %417 = vmatprep.subr.mxu0 0.0
      %418 = vmatpush1.msra.mxu0 0.0
      %419 = vmatprep.subr.mxu0 0.0
      %420 = vmatpush1.msra.mxu0 0.0
      %421 = vmatprep.subr.mxu0 0.0
      %422 = vmatpush1.msra.mxu0 0.0
      %423 = vmatprep.subr.mxu0 0.0
      %424 = vmatpush1.msra.mxu0 0.0
      %425 = vmatprep.subr.mxu0 0.0
      %426 = vmatpush1.msra.mxu0 0.0
      %427 = vmatprep.subr.mxu0 0.0
      %428 = vmatpush1.msra.mxu0 0.0
      %429 = vmatprep.subr.mxu0 0.0
      %430 = vmatpush1.msra.mxu0 0.0
      %431 = vmatprep.subr.mxu0 0.0
      %432 = vmatpush1.msra.mxu0 0.0
      %433 = vmatprep.subr.mxu0 0.0
      %434 = vmatpush1.msra.mxu0 0.0
      %435 = vmatprep.subr.mxu0 0.0
      %436 = vmatpush1.msra.mxu0 0.0
      %437 = vmatprep.subr.mxu0 0.0
      %438 = vmatpush1.msra.mxu0 0.0
      %439 = vmatprep.subr.mxu0 0.0
      %440 = vmatpush1.msra.mxu0 0.0
      %441 = vmatprep.mubr.f32.mxu0 0.0
      %442 = vmatmul.mubr.f32.gmra.mrb[0].mxu0 %v375
      %v443 = vpop.f32.mrb[0].mxu0
      %v444 = vadd.f32 %v372, %v443
      %v445 = vpop.f32.mrb[0].mxu0
      %446 = vdwg.mxu0
      %448 = vrot.lane.b32.xlu0 %v444, 96
      %v449 = vpop.permute.xlu0 %448
      %vm450 = vcmask 64512
      %v451 = vsel %vm450, %v444, 0
      %v453 = vsel %vm450, %v449, 0
      %455 = vmatprep.subr.mxu0 0.0
      %456 = vmatpush1.xpose.msra.mxu0 %v453
      %457 = vmatprep.subr.mxu0 0.0
      %458 = vmatpush1.xpose.msra.mxu0 0.0
      %459 = vmatprep.subr.mxu0 0.0
      %460 = vmatpush1.xpose.msra.mxu0 0.0
      %461 = vmatprep.subr.mxu0 0.0
      %462 = vmatpush1.xpose.msra.mxu0 0.0
      %463 = vmatprep.subr.mxu0 0.0
      %464 = vmatpush1.xpose.msra.mxu0 0.0
      %465 = vmatprep.subr.mxu0 0.0
      %466 = vmatpush1.xpose.msra.mxu0 0.0
      %467 = vmatprep.subr.mxu0 0.0
      %468 = vmatpush1.xpose.msra.mxu0 0.0
      %469 = vmatprep.subr.mxu0 0.0
      %470 = vmatpush1.xpose.msra.mxu0 0.0
      %471 = vmatprep.subr.mxu0 0.0
      %472 = vmatpush1.xpose.msra.mxu0 0.0
      %473 = vmatprep.subr.mxu0 0.0
      %474 = vmatpush1.xpose.msra.mxu0 0.0
      %475 = vmatprep.subr.mxu0 0.0
      %476 = vmatpush1.xpose.msra.mxu0 0.0
      %477 = vmatprep.subr.mxu0 0.0
      %478 = vmatpush1.xpose.msra.mxu0 0.0
      %479 = vmatprep.subr.mxu0 0.0
      %480 = vmatpush1.xpose.msra.mxu0 0.0
      %481 = vmatprep.subr.mxu0 0.0
      %482 = vmatpush1.xpose.msra.mxu0 0.0
      %483 = vmatprep.subr.mxu0 0.0
      %484 = vmatpush1.xpose.msra.mxu0 0.0
      %485 = vmatprep.subr.mxu0 0.0
      %486 = vmatpush1.xpose.msra.mxu0 0.0
      %487 = vmatprep.subr.mxu0 0.0
      %488 = vmatpush1.xpose.msra.mxu0 0.0
      %489 = vmatprep.subr.mxu0 0.0
      %490 = vmatpush1.xpose.msra.mxu0 0.0
      %491 = vmatprep.subr.mxu0 0.0
      %492 = vmatpush1.xpose.msra.mxu0 0.0
      %493 = vmatprep.subr.mxu0 0.0
      %494 = vmatpush1.xpose.msra.mxu0 0.0
      %495 = vmatprep.subr.mxu0 0.0
      %496 = vmatpush1.xpose.msra.mxu0 0.0
      %497 = vmatprep.subr.mxu0 0.0
      %498 = vmatpush1.xpose.msra.mxu0 0.0
      %499 = vmatprep.subr.mxu0 0.0
      %500 = vmatpush1.xpose.msra.mxu0 0.0
      %501 = vmatprep.subr.mxu0 0.0
      %502 = vmatpush1.xpose.msra.mxu0 0.0
      %503 = vmatprep.subr.mxu0 0.0
      %504 = vmatpush1.xpose.msra.mxu0 0.0
      %505 = vmatprep.subr.mxu0 0.0
      %506 = vmatpush1.xpose.msra.mxu0 0.0
      %507 = vmatprep.subr.mxu0 0.0
      %508 = vmatpush1.xpose.msra.mxu0 0.0
      %509 = vmatprep.subr.mxu0 0.0
      %510 = vmatpush1.xpose.msra.mxu0 0.0
      %511 = vmatprep.subr.mxu0 0.0
      %512 = vmatpush1.xpose.msra.mxu0 0.0
      %513 = vmatprep.subr.mxu0 0.0
      %514 = vmatpush1.xpose.msra.mxu0 0.0
      %515 = vmatprep.subr.mxu0 0.0
      %516 = vmatpush1.xpose.msra.mxu0 0.0
      %517 = vmatprep.subr.mxu0 0.0
      %518 = vmatpush1.xpose.msra.mxu0 0.0
      %519 = vmatprep.mubr.f32.mxu0 0.0
      %520 = vmatmul.mubr.f32.gmra.mrb[0].mxu0 %v451
      %v521 = vpop.f32.mrb[0].mxu0
      %v522 = vadd.f32 0.0, %v521
      %v523 = vpop.f32.mrb[0].mxu0
      %524 = vdwg.mxu0
      %v525 = vsel %vm450, %v522, -inf
      %526 = vmax.xlane.f32.xlu0 %v525
      %v527 = vpop.xlane.xlu0 %526
      %v528 = vsub.f32 %v522, %v527
      %v529 = vmul.f32 %v528, 1.442695
      %v530 = vpow.pop %v529
      %v531 = vsel %vm450, %v530, 0.0
      %532 = vadd.xlane.f32.xlu0 %v531
      %v533 = vpop.xlane.xlu0 %532
      %v534 = vrcp.pop %v533
      %v535 = vmul.f32 %v530, %v534
      %536 = vrot.lane.b32.xlu0 %v444, 64
      %v537 = vpop.permute.xlu0 %536
      %v540 = vsel %vm450, %v535, 0
      %542 = vmatprep.subr.mxu0 0.0
      %543 = vmatpush1.msra.mxu0 %v537
      %544 = vmatprep.subr.mxu0 0.0
      %545 = vmatpush1.msra.mxu0 0.0
      %546 = vmatprep.subr.mxu0 0.0
      %547 = vmatpush1.msra.mxu0 0.0
      %548 = vmatprep.subr.mxu0 0.0
      %549 = vmatpush1.msra.mxu0 0.0
      %550 = vmatprep.subr.mxu0 0.0
      %551 = vmatpush1.msra.mxu0 0.0
      %552 = vmatprep.subr.mxu0 0.0
      %553 = vmatpush1.msra.mxu0 0.0
      %554 = vmatprep.subr.mxu0 0.0
      %555 = vmatpush1.msra.mxu0 0.0
      %556 = vmatprep.subr.mxu0 0.0
      %557 = vmatpush1.msra.mxu0 0.0
      %558 = vmatprep.subr.mxu0 0.0
      %559 = vmatpush1.msra.mxu0 0.0
      %560 = vmatprep.subr.mxu0 0.0
      %561 = vmatpush1.msra.mxu0 0.0
      %562 = vmatprep.subr.mxu0 0.0
      %563 = vmatpush1.msra.mxu0 0.0
      %564 = vmatprep.subr.mxu0 0.0
      %565 = vmatpush1.msra.mxu0 0.0
      %566 = vmatprep.subr.mxu0 0.0
      %567 = vmatpush1.msra.mxu0 0.0
      %568 = vmatprep.subr.mxu0 0.0
      %569 = vmatpush1.msra.mxu0 0.0
      %570 = vmatprep.subr.mxu0 0.0
      %571 = vmatpush1.msra.mxu0 0.0
      %572 = vmatprep.subr.mxu0 0.0
      %573 = vmatpush1.msra.mxu0 0.0
      %574 = vmatprep.subr.mxu0 0.0
      %575 = vmatpush1.msra.mxu0 0.0
      %576 = vmatprep.subr.mxu0 0.0
      %577 = vmatpush1.msra.mxu0 0.0
      %578 = vmatprep.subr.mxu0 0.0
      %579 = vmatpush1.msra.mxu0 0.0
      %580 = vmatprep.subr.mxu0 0.0
      %581 = vmatpush1.msra.mxu0 0.0
      %582 = vmatprep.subr.mxu0 0.0
      %583 = vmatpush1.msra.mxu0 0.0
      %584 = vmatprep.subr.mxu0 0.0
      %585 = vmatpush1.msra.mxu0 0.0
      %586 = vmatprep.subr.mxu0 0.0
      %587 = vmatpush1.msra.mxu0 0.0
      %588 = vmatprep.subr.mxu0 0.0
      %589 = vmatpush1.msra.mxu0 0.0
      %590 = vmatprep.subr.mxu0 0.0
      %591 = vmatpush1.msra.mxu0 0.0
      %592 = vmatprep.subr.mxu0 0.0
      %593 = vmatpush1.msra.mxu0 0.0
      %594 = vmatprep.subr.mxu0 0.0
      %595 = vmatpush1.msra.mxu0 0.0
      %596 = vmatprep.subr.mxu0 0.0
      %597 = vmatpush1.msra.mxu0 0.0
      %598 = vmatprep.subr.mxu0 0.0
      %599 = vmatpush1.msra.mxu0 0.0
      %600 = vmatprep.subr.mxu0 0.0
      %601 = vmatpush1.msra.mxu0 0.0
      %602 = vmatprep.subr.mxu0 0.0
      %603 = vmatpush1.msra.mxu0 0.0
      %604 = vmatprep.subr.mxu0 0.0
      %605 = vmatpush1.msra.mxu0 0.0
      %606 = vmatprep.mubr.f32.mxu0 0.0
      %607 = vmatmul.mubr.f32.gmra.mrb[0].mxu0 %v540
      %v608 = vpop.f32.mrb[0].mxu0
      %v609 = vadd.f32 0.0, %v608
      %v610 = vpop.f32.mrb[0].mxu0
      %611 = vdwg.mxu0
      %612 = vrot.lane.b32.xlu0 %v444, 120
      %v613 = vpop.permute.xlu0 %612
      %614 = vrot.lane.b32.xlu0 %v444, 88
      %v615 = vpop.permute.xlu0 %614
      %v616 = vsel %vm450, %v613, 0
      %v618 = vsel %vm450, %v615, 0
      %620 = vmatprep.subr.mxu0 0.0
      %621 = vmatpush1.xpose.msra.mxu0 %v618
      %622 = vmatprep.subr.mxu0 0.0
      %623 = vmatpush1.xpose.msra.mxu0 0.0
      %624 = vmatprep.subr.mxu0 0.0
      %625 = vmatpush1.xpose.msra.mxu0 0.0
      %626 = vmatprep.subr.mxu0 0.0
      %627 = vmatpush1.xpose.msra.mxu0 0.0
      %628 = vmatprep.subr.mxu0 0.0
      %629 = vmatpush1.xpose.msra.mxu0 0.0
      %630 = vmatprep.subr.mxu0 0.0
      %631 = vmatpush1.xpose.msra.mxu0 0.0
      %632 = vmatprep.subr.mxu0 0.0
      %633 = vmatpush1.xpose.msra.mxu0 0.0
      %634 = vmatprep.subr.mxu0 0.0
      %635 = vmatpush1.xpose.msra.mxu0 0.0
      %636 = vmatprep.subr.mxu0 0.0
      %637 = vmatpush1.xpose.msra.mxu0 0.0
      %638 = vmatprep.subr.mxu0 0.0
      %639 = vmatpush1.xpose.msra.mxu0 0.0
      %640 = vmatprep.subr.mxu0 0.0
      %641 = vmatpush1.xpose.msra.mxu0 0.0
      %642 = vmatprep.subr.mxu0 0.0
      %643 = vmatpush1.xpose.msra.mxu0 0.0
      %644 = vmatprep.subr.mxu0 0.0
      %645 = vmatpush1.xpose.msra.mxu0 0.0
      %646 = vmatprep.subr.mxu0 0.0
      %647 = vmatpush1.xpose.msra.mxu0 0.0
      %648 = vmatprep.subr.mxu0 0.0
      %649 = vmatpush1.xpose.msra.mxu0 0.0
      %650 = vmatprep.subr.mxu0 0.0
      %651 = vmatpush1.xpose.msra.mxu0 0.0
      %652 = vmatprep.subr.mxu0 0.0
      %653 = vmatpush1.xpose.msra.mxu0 0.0
      %654 = vmatprep.subr.mxu0 0.0
      %655 = vmatpush1.xpose.msra.mxu0 0.0
      %656 = vmatprep.subr.mxu0 0.0
      %657 = vmatpush1.xpose.msra.mxu0 0.0
      %658 = vmatprep.subr.mxu0 0.0
      %659 = vmatpush1.xpose.msra.mxu0 0.0
      %660 = vmatprep.subr.mxu0 0.0
      %661 = vmatpush1.xpose.msra.mxu0 0.0
      %662 = vmatprep.subr.mxu0 0.0
      %663 = vmatpush1.xpose.msra.mxu0 0.0
      %664 = vmatprep.subr.mxu0 0.0
      %665 = vmatpush1.xpose.msra.mxu0 0.0
      %666 = vmatprep.subr.mxu0 0.0
      %667 = vmatpush1.xpose.msra.mxu0 0.0
      %668 = vmatprep.subr.mxu0 0.0
      %669 = vmatpush1.xpose.msra.mxu0 0.0
      %670 = vmatprep.subr.mxu0 0.0
      %671 = vmatpush1.xpose.msra.mxu0 0.0
      %672 = vmatprep.subr.mxu0 0.0
      %673 = vmatpush1.xpose.msra.mxu0 0.0
      %674 = vmatprep.subr.mxu0 0.0
      %675 = vmatpush1.xpose.msra.mxu0 0.0
      %676 = vmatprep.subr.mxu0 0.0
      %677 = vmatpush1.xpose.msra.mxu0 0.0
      %678 = vmatprep.subr.mxu0 0.0
      %679 = vmatpush1.xpose.msra.mxu0 0.0
      %680 = vmatprep.subr.mxu0 0.0
      %681 = vmatpush1.xpose.msra.mxu0 0.0
      %682 = vmatprep.subr.mxu0 0.0
      %683 = vmatpush1.xpose.msra.mxu0 0.0
      %684 = vmatprep.mubr.f32.mxu0 0.0
      %685 = vmatmul.mubr.f32.gmra.mrb[0].mxu0 %v616
      %v686 = vpop.f32.mrb[0].mxu0
      %v687 = vadd.f32 0.0, %v686
      %v688 = vpop.f32.mrb[0].mxu0
      %689 = vdwg.mxu0
      %v690 = vsel %vm450, %v687, -inf
      %691 = vmax.xlane.f32.xlu0 %v690
      %v692 = vpop.xlane.xlu0 %691
      %v693 = vsub.f32 %v687, %v692
      %v694 = vmul.f32 %v693, 1.442695
      %v695 = vpow.pop %v694
      %v696 = vsel %vm450, %v695, 0.0
      %697 = vadd.xlane.f32.xlu0 %v696
      %v698 = vpop.xlane.xlu0 %697
      %v699 = vrcp.pop %v698
      %v700 = vmul.f32 %v695, %v699
      %701 = vrot.lane.b32.xlu0 %v444, 56
      %v702 = vpop.permute.xlu0 %701
      %v705 = vsel %vm450, %v700, 0
      %707 = vmatprep.subr.mxu0 0.0
      %708 = vmatpush1.msra.mxu0 %v702
      %709 = vmatprep.subr.mxu0 0.0
      %710 = vmatpush1.msra.mxu0 0.0
      %711 = vmatprep.subr.mxu0 0.0
      %712 = vmatpush1.msra.mxu0 0.0
      %713 = vmatprep.subr.mxu0 0.0
      %714 = vmatpush1.msra.mxu0 0.0
      %715 = vmatprep.subr.mxu0 0.0
      %716 = vmatpush1.msra.mxu0 0.0
      %717 = vmatprep.subr.mxu0 0.0
      %718 = vmatpush1.msra.mxu0 0.0
      %719 = vmatprep.subr.mxu0 0.0
      %720 = vmatpush1.msra.mxu0 0.0
      %721 = vmatprep.subr.mxu0 0.0
      %722 = vmatpush1.msra.mxu0 0.0
      %723 = vmatprep.subr.mxu0 0.0
      %724 = vmatpush1.msra.mxu0 0.0
      %725 = vmatprep.subr.mxu0 0.0
      %726 = vmatpush1.msra.mxu0 0.0
      %727 = vmatprep.subr.mxu0 0.0
      %728 = vmatpush1.msra.mxu0 0.0
      %729 = vmatprep.subr.mxu0 0.0
      %730 = vmatpush1.msra.mxu0 0.0
      %731 = vmatprep.subr.mxu0 0.0
      %732 = vmatpush1.msra.mxu0 0.0
      %733 = vmatprep.subr.mxu0 0.0
      %734 = vmatpush1.msra.mxu0 0.0
      %735 = vmatprep.subr.mxu0 0.0
      %736 = vmatpush1.msra.mxu0 0.0
      %737 = vmatprep.subr.mxu0 0.0
      %738 = vmatpush1.msra.mxu0 0.0
      %739 = vmatprep.subr.mxu0 0.0
      %740 = vmatpush1.msra.mxu0 0.0
      %741 = vmatprep.subr.mxu0 0.0
      %742 = vmatpush1.msra.mxu0 0.0
      %743 = vmatprep.subr.mxu0 0.0
      %744 = vmatpush1.msra.mxu0 0.0
      %745 = vmatprep.subr.mxu0 0.0
      %746 = vmatpush1.msra.mxu0 0.0
      %747 = vmatprep.subr.mxu0 0.0
      %748 = vmatpush1.msra.mxu0 0.0
      %749 = vmatprep.subr.mxu0 0.0
      %750 = vmatpush1.msra.mxu0 0.0
      %751 = vmatprep.subr.mxu0 0.0
      %752 = vmatpush1.msra.mxu0 0.0
      %753 = vmatprep.subr.mxu0 0.0
      %754 = vmatpush1.msra.mxu0 0.0
      %755 = vmatprep.subr.mxu0 0.0
      %756 = vmatpush1.msra.mxu0 0.0
      %757 = vmatprep.subr.mxu0 0.0
      %758 = vmatpush1.msra.mxu0 0.0
      %759 = vmatprep.subr.mxu0 0.0
      %760 = vmatpush1.msra.mxu0 0.0
      %761 = vmatprep.subr.mxu0 0.0
      %762 = vmatpush1.msra.mxu0 0.0
      %763 = vmatprep.subr.mxu0 0.0
      %764 = vmatpush1.msra.mxu0 0.0
      %765 = vmatprep.subr.mxu0 0.0
      %766 = vmatpush1.msra.mxu0 0.0
      %767 = vmatprep.subr.mxu0 0.0
      %768 = vmatpush1.msra.mxu0 0.0
      %769 = vmatprep.subr.mxu0 0.0
      %770 = vmatpush1.msra.mxu0 0.0
      %771 = vmatprep.mubr.f32.mxu0 0.0
      %772 = vmatmul.mubr.f32.gmra.mrb[0].mxu0 %v705
      %v773 = vpop.f32.mrb[0].mxu0
      %v774 = vadd.f32 0.0, %v773
      %v775 = vpop.f32.mrb[0].mxu0
      %776 = vdwg.mxu0
      %777 = vrot.lane.b32.xlu0 %v444, 112
      %v778 = vpop.permute.xlu0 %777
      %779 = vrot.lane.b32.xlu0 %v444, 80
      %v780 = vpop.permute.xlu0 %779
      %v781 = vsel %vm450, %v778, 0
      %v783 = vsel %vm450, %v780, 0
      %785 = vmatprep.subr.mxu0 0.0
      %786 = vmatpush1.xpose.msra.mxu0 %v783
      %787 = vmatprep.subr.mxu0 0.0
      %788 = vmatpush1.xpose.msra.mxu0 0.0
      %789 = vmatprep.subr.mxu0 0.0
      %790 = vmatpush1.xpose.msra.mxu0 0.0
      %791 = vmatprep.subr.mxu0 0.0
      %792 = vmatpush1.xpose.msra.mxu0 0.0
      %793 = vmatprep.subr.mxu0 0.0
      %794 = vmatpush1.xpose.msra.mxu0 0.0
      %795 = vmatprep.subr.mxu0 0.0
      %796 = vmatpush1.xpose.msra.mxu0 0.0
      %797 = vmatprep.subr.mxu0 0.0
      %798 = vmatpush1.xpose.msra.mxu0 0.0
      %799 = vmatprep.subr.mxu0 0.0
      %800 = vmatpush1.xpose.msra.mxu0 0.0
      %801 = vmatprep.subr.mxu0 0.0
      %802 = vmatpush1.xpose.msra.mxu0 0.0
      %803 = vmatprep.subr.mxu0 0.0
      %804 = vmatpush1.xpose.msra.mxu0 0.0
      %805 = vmatprep.subr.mxu0 0.0
      %806 = vmatpush1.xpose.msra.mxu0 0.0
      %807 = vmatprep.subr.mxu0 0.0
      %808 = vmatpush1.xpose.msra.mxu0 0.0
      %809 = vmatprep.subr.mxu0 0.0
      %810 = vmatpush1.xpose.msra.mxu0 0.0
      %811 = vmatprep.subr.mxu0 0.0
      %812 = vmatpush1.xpose.msra.mxu0 0.0
      %813 = vmatprep.subr.mxu0 0.0
      %814 = vmatpush1.xpose.msra.mxu0 0.0
      %815 = vmatprep.subr.mxu0 0.0
      %816 = vmatpush1.xpose.msra.mxu0 0.0
      %817 = vmatprep.subr.mxu0 0.0
      %818 = vmatpush1.xpose.msra.mxu0 0.0
      %819 = vmatprep.subr.mxu0 0.0
      %820 = vmatpush1.xpose.msra.mxu0 0.0
      %821 = vmatprep.subr.mxu0 0.0
      %822 = vmatpush1.xpose.msra.mxu0 0.0
      %823 = vmatprep.subr.mxu0 0.0
      %824 = vmatpush1.xpose.msra.mxu0 0.0
      %825 = vmatprep.subr.mxu0 0.0
      %826 = vmatpush1.xpose.msra.mxu0 0.0
      %827 = vmatprep.subr.mxu0 0.0
      %828 = vmatpush1.xpose.msra.mxu0 0.0
      %829 = vmatprep.subr.mxu0 0.0
      %830 = vmatpush1.xpose.msra.mxu0 0.0
      %831 = vmatprep.subr.mxu0 0.0
      %832 = vmatpush1.xpose.msra.mxu0 0.0
      %833 = vmatprep.subr.mxu0 0.0
      %834 = vmatpush1.xpose.msra.mxu0 0.0
      %835 = vmatprep.subr.mxu0 0.0
      %836 = vmatpush1.xpose.msra.mxu0 0.0
      %837 = vmatprep.subr.mxu0 0.0
      %838 = vmatpush1.xpose.msra.mxu0 0.0
      %839 = vmatprep.subr.mxu0 0.0
      %840 = vmatpush1.xpose.msra.mxu0 0.0
      %841 = vmatprep.subr.mxu0 0.0
      %842 = vmatpush1.xpose.msra.mxu0 0.0
      %843 = vmatprep.subr.mxu0 0.0
      %844 = vmatpush1.xpose.msra.mxu0 0.0
      %845 = vmatprep.subr.mxu0 0.0
      %846 = vmatpush1.xpose.msra.mxu0 0.0
      %847 = vmatprep.subr.mxu0 0.0
      %848 = vmatpush1.xpose.msra.mxu0 0.0
      %849 = vmatprep.mubr.f32.mxu0 0.0
      %850 = vmatmul.mubr.f32.gmra.mrb[0].mxu0 %v781
      %v851 = vpop.f32.mrb[0].mxu0
      %v852 = vadd.f32 0.0, %v851
      %v853 = vpop.f32.mrb[0].mxu0
      %854 = vdwg.mxu0
      %v855 = vsel %vm450, %v852, -inf
      %856 = vmax.xlane.f32.xlu0 %v855
      %v857 = vpop.xlane.xlu0 %856
      %v858 = vsub.f32 %v852, %v857
      %v859 = vmul.f32 %v858, 1.442695
      %v860 = vpow.pop %v859
      %v861 = vsel %vm450, %v860, 0.0
      %862 = vadd.xlane.f32.xlu0 %v861
      %v863 = vpop.xlane.xlu0 %862
      %v864 = vrcp.pop %v863
      %v865 = vmul.f32 %v860, %v864
      %866 = vrot.lane.b32.xlu0 %v444, 48
      %v867 = vpop.permute.xlu0 %866
      %v870 = vsel %vm450, %v865, 0
      %872 = vmatprep.subr.mxu0 0.0
      %873 = vmatpush1.msra.mxu0 %v867
      %874 = vmatprep.subr.mxu0 0.0
      %875 = vmatpush1.msra.mxu0 0.0
      %876 = vmatprep.subr.mxu0 0.0
      %877 = vmatpush1.msra.mxu0 0.0
      %878 = vmatprep.subr.mxu0 0.0
      %879 = vmatpush1.msra.mxu0 0.0
      %880 = vmatprep.subr.mxu0 0.0
      %881 = vmatpush1.msra.mxu0 0.0
      %882 = vmatprep.subr.mxu0 0.0
      %883 = vmatpush1.msra.mxu0 0.0
      %884 = vmatprep.subr.mxu0 0.0
      %885 = vmatpush1.msra.mxu0 0.0
      %886 = vmatprep.subr.mxu0 0.0
      %887 = vmatpush1.msra.mxu0 0.0
      %888 = vmatprep.subr.mxu0 0.0
      %889 = vmatpush1.msra.mxu0 0.0
      %890 = vmatprep.subr.mxu0 0.0
      %891 = vmatpush1.msra.mxu0 0.0
      %892 = vmatprep.subr.mxu0 0.0
      %893 = vmatpush1.msra.mxu0 0.0
      %894 = vmatprep.subr.mxu0 0.0
      %895 = vmatpush1.msra.mxu0 0.0
      %896 = vmatprep.subr.mxu0 0.0
      %897 = vmatpush1.msra.mxu0 0.0
      %898 = vmatprep.subr.mxu0 0.0
      %899 = vmatpush1.msra.mxu0 0.0
      %900 = vmatprep.subr.mxu0 0.0
      %901 = vmatpush1.msra.mxu0 0.0
      %902 = vmatprep.subr.mxu0 0.0
      %903 = vmatpush1.msra.mxu0 0.0
      %904 = vmatprep.subr.mxu0 0.0
      %905 = vmatpush1.msra.mxu0 0.0
      %906 = vmatprep.subr.mxu0 0.0
      %907 = vmatpush1.msra.mxu0 0.0
      %908 = vmatprep.subr.mxu0 0.0
      %909 = vmatpush1.msra.mxu0 0.0
      %910 = vmatprep.subr.mxu0 0.0
      %911 = vmatpush1.msra.mxu0 0.0
      %912 = vmatprep.subr.mxu0 0.0
      %913 = vmatpush1.msra.mxu0 0.0
      %914 = vmatprep.subr.mxu0 0.0
      %915 = vmatpush1.msra.mxu0 0.0
      %916 = vmatprep.subr.mxu0 0.0
      %917 = vmatpush1.msra.mxu0 0.0
      %918 = vmatprep.subr.mxu0 0.0
      %919 = vmatpush1.msra.mxu0 0.0
      %920 = vmatprep.subr.mxu0 0.0
      %921 = vmatpush1.msra.mxu0 0.0
      %922 = vmatprep.subr.mxu0 0.0
      %923 = vmatpush1.msra.mxu0 0.0
      %924 = vmatprep.subr.mxu0 0.0
      %925 = vmatpush1.msra.mxu0 0.0
      %926 = vmatprep.subr.mxu0 0.0
      %927 = vmatpush1.msra.mxu0 0.0
      %928 = vmatprep.subr.mxu0 0.0
      %929 = vmatpush1.msra.mxu0 0.0
      %930 = vmatprep.subr.mxu0 0.0
      %931 = vmatpush1.msra.mxu0 0.0
      %932 = vmatprep.subr.mxu0 0.0
      %933 = vmatpush1.msra.mxu0 0.0
      %934 = vmatprep.subr.mxu0 0.0
      %935 = vmatpush1.msra.mxu0 0.0
      %936 = vmatprep.mubr.f32.mxu0 0.0
      %937 = vmatmul.mubr.f32.gmra.mrb[0].mxu0 %v870
      %v938 = vpop.f32.mrb[0].mxu0
      %v939 = vadd.f32 0.0, %v938
      %v940 = vpop.f32.mrb[0].mxu0
      %941 = vdwg.mxu0
      %942 = vrot.lane.b32.xlu0 %v444, 104
      %v943 = vpop.permute.xlu0 %942
      %944 = vrot.lane.b32.xlu0 %v444, 72
      %v945 = vpop.permute.xlu0 %944
      %v946 = vsel %vm450, %v943, 0
      %v948 = vsel %vm450, %v945, 0
      %950 = vmatprep.subr.mxu0 0.0
      %951 = vmatpush1.xpose.msra.mxu0 %v948
      %952 = vmatprep.subr.mxu0 0.0
      %953 = vmatpush1.xpose.msra.mxu0 0.0
      %954 = vmatprep.subr.mxu0 0.0
      %955 = vmatpush1.xpose.msra.mxu0 0.0
      %956 = vmatprep.subr.mxu0 0.0
      %957 = vmatpush1.xpose.msra.mxu0 0.0
      %958 = vmatprep.subr.mxu0 0.0
      %959 = vmatpush1.xpose.msra.mxu0 0.0
      %960 = vmatprep.subr.mxu0 0.0
      %961 = vmatpush1.xpose.msra.mxu0 0.0
      %962 = vmatprep.subr.mxu0 0.0
      %963 = vmatpush1.xpose.msra.mxu0 0.0
      %964 = vmatprep.subr.mxu0 0.0
      %965 = vmatpush1.xpose.msra.mxu0 0.0
      %966 = vmatprep.subr.mxu0 0.0
      %967 = vmatpush1.xpose.msra.mxu0 0.0
      %968 = vmatprep.subr.mxu0 0.0
      %969 = vmatpush1.xpose.msra.mxu0 0.0
      %970 = vmatprep.subr.mxu0 0.0
      %971 = vmatpush1.xpose.msra.mxu0 0.0
      %972 = vmatprep.subr.mxu0 0.0
      %973 = vmatpush1.xpose.msra.mxu0 0.0
      %974 = vmatprep.subr.mxu0 0.0
      %975 = vmatpush1.xpose.msra.mxu0 0.0
      %976 = vmatprep.subr.mxu0 0.0
      %977 = vmatpush1.xpose.msra.mxu0 0.0
      %978 = vmatprep.subr.mxu0 0.0
      %979 = vmatpush1.xpose.msra.mxu0 0.0
      %980 = vmatprep.subr.mxu0 0.0
      %981 = vmatpush1.xpose.msra.mxu0 0.0
      %982 = vmatprep.subr.mxu0 0.0
      %983 = vmatpush1.xpose.msra.mxu0 0.0
      %984 = vmatprep.subr.mxu0 0.0
      %985 = vmatpush1.xpose.msra.mxu0 0.0
      %986 = vmatprep.subr.mxu0 0.0
      %987 = vmatpush1.xpose.msra.mxu0 0.0
      %988 = vmatprep.subr.mxu0 0.0
      %989 = vmatpush1.xpose.msra.mxu0 0.0
      %990 = vmatprep.subr.mxu0 0.0
      %991 = vmatpush1.xpose.msra.mxu0 0.0
      %992 = vmatprep.subr.mxu0 0.0
      %993 = vmatpush1.xpose.msra.mxu0 0.0
      %994 = vmatprep.subr.mxu0 0.0
      %995 = vmatpush1.xpose.msra.mxu0 0.0
      %996 = vmatprep.subr.mxu0 0.0
      %997 = vmatpush1.xpose.msra.mxu0 0.0
      %998 = vmatprep.subr.mxu0 0.0
      %999 = vmatpush1.xpose.msra.mxu0 0.0
      %1000 = vmatprep.subr.mxu0 0.0
      %1001 = vmatpush1.xpose.msra.mxu0 0.0
      %1002 = vmatprep.subr.mxu0 0.0
      %1003 = vmatpush1.xpose.msra.mxu0 0.0
      %1004 = vmatprep.subr.mxu0 0.0
      %1005 = vmatpush1.xpose.msra.mxu0 0.0
      %1006 = vmatprep.subr.mxu0 0.0
      %1007 = vmatpush1.xpose.msra.mxu0 0.0
      %1008 = vmatprep.subr.mxu0 0.0
      %1009 = vmatpush1.xpose.msra.mxu0 0.0
      %1010 = vmatprep.subr.mxu0 0.0
      %1011 = vmatpush1.xpose.msra.mxu0 0.0
      %1012 = vmatprep.subr.mxu0 0.0
      %1013 = vmatpush1.xpose.msra.mxu0 0.0
      %1014 = vmatprep.mubr.f32.mxu0 0.0
      %1015 = vmatmul.mubr.f32.gmra.mrb[0].mxu0 %v946
      %v1016 = vpop.f32.mrb[0].mxu0
      %v1017 = vadd.f32 0.0, %v1016
      %v1018 = vpop.f32.mrb[0].mxu0
      %1019 = vdwg.mxu0
      %v1020 = vsel %vm450, %v1017, -inf
      %1021 = vmax.xlane.f32.xlu0 %v1020
      %v1022 = vpop.xlane.xlu0 %1021
      %v1023 = vsub.f32 %v1017, %v1022
      %v1024 = vmul.f32 %v1023, 1.442695
      %v1025 = vpow.pop %v1024
      %v1026 = vsel %vm450, %v1025, 0.0
      %1027 = vadd.xlane.f32.xlu0 %v1026
      %v1028 = vpop.xlane.xlu0 %1027
      %v1029 = vrcp.pop %v1028
      %v1030 = vmul.f32 %v1025, %v1029
      %1031 = vrot.lane.b32.xlu0 %v444, 40
      %v1032 = vpop.permute.xlu0 %1031
      %v1035 = vsel %vm450, %v1030, 0
      %1037 = vmatprep.subr.mxu0 0.0
      %1038 = vmatpush1.msra.mxu0 %v1032
      %1039 = vmatprep.subr.mxu0 0.0
      %1040 = vmatpush1.msra.mxu0 0.0
      %1041 = vmatprep.subr.mxu0 0.0
      %1042 = vmatpush1.msra.mxu0 0.0
      %1043 = vmatprep.subr.mxu0 0.0
      %1044 = vmatpush1.msra.mxu0 0.0
      %1045 = vmatprep.subr.mxu0 0.0
      %1046 = vmatpush1.msra.mxu0 0.0
      %1047 = vmatprep.subr.mxu0 0.0
      %1048 = vmatpush1.msra.mxu0 0.0
      %1049 = vmatprep.subr.mxu0 0.0
      %1050 = vmatpush1.msra.mxu0 0.0
      %1051 = vmatprep.subr.mxu0 0.0
      %1052 = vmatpush1.msra.mxu0 0.0
      %1053 = vmatprep.subr.mxu0 0.0
      %1054 = vmatpush1.msra.mxu0 0.0
      %1055 = vmatprep.subr.mxu0 0.0
      %1056 = vmatpush1.msra.mxu0 0.0
      %1057 = vmatprep.subr.mxu0 0.0
      %1058 = vmatpush1.msra.mxu0 0.0
      %1059 = vmatprep.subr.mxu0 0.0
      %1060 = vmatpush1.msra.mxu0 0.0
      %1061 = vmatprep.subr.mxu0 0.0
      %1062 = vmatpush1.msra.mxu0 0.0
      %1063 = vmatprep.subr.mxu0 0.0
      %1064 = vmatpush1.msra.mxu0 0.0
      %1065 = vmatprep.subr.mxu0 0.0
      %1066 = vmatpush1.msra.mxu0 0.0
      %1067 = vmatprep.subr.mxu0 0.0
      %1068 = vmatpush1.msra.mxu0 0.0
      %1069 = vmatprep.subr.mxu0 0.0
      %1070 = vmatpush1.msra.mxu0 0.0
      %1071 = vmatprep.subr.mxu0 0.0
      %1072 = vmatpush1.msra.mxu0 0.0
      %1073 = vmatprep.subr.mxu0 0.0
      %1074 = vmatpush1.msra.mxu0 0.0
      %1075 = vmatprep.subr.mxu0 0.0
      %1076 = vmatpush1.msra.mxu0 0.0
      %1077 = vmatprep.subr.mxu0 0.0
      %1078 = vmatpush1.msra.mxu0 0.0
      %1079 = vmatprep.subr.mxu0 0.0
      %1080 = vmatpush1.msra.mxu0 0.0
      %1081 = vmatprep.subr.mxu0 0.0
      %1082 = vmatpush1.msra.mxu0 0.0
      %1083 = vmatprep.subr.mxu0 0.0
      %1084 = vmatpush1.msra.mxu0 0.0
      %1085 = vmatprep.subr.mxu0 0.0
      %1086 = vmatpush1.msra.mxu0 0.0
      %1087 = vmatprep.subr.mxu0 0.0
      %1088 = vmatpush1.msra.mxu0 0.0
      %1089 = vmatprep.subr.mxu0 0.0
      %1090 = vmatpush1.msra.mxu0 0.0
      %1091 = vmatprep.subr.mxu0 0.0
      %1092 = vmatpush1.msra.mxu0 0.0
      %1093 = vmatprep.subr.mxu0 0.0
      %1094 = vmatpush1.msra.mxu0 0.0
      %1095 = vmatprep.subr.mxu0 0.0
      %1096 = vmatpush1.msra.mxu0 0.0
      %1097 = vmatprep.subr.mxu0 0.0
      %1098 = vmatpush1.msra.mxu0 0.0
      %1099 = vmatprep.subr.mxu0 0.0
      %1100 = vmatpush1.msra.mxu0 0.0
      %1101 = vmatprep.mubr.f32.mxu0 0.0
      %1102 = vmatmul.mubr.f32.gmra.mrb[0].mxu0 %v1035
      %v1103 = vpop.f32.mrb[0].mxu0
      %v1104 = vadd.f32 0.0, %v1103
      %v1105 = vpop.f32.mrb[0].mxu0
      %1106 = vdwg.mxu0
      %1108 = vrot.lane.b32.xlu0 %v774, 8
      %v1109 = vpop.permute.xlu0 %1108
      %1112 = vrot.lane.b32.xlu0 %v939, 16
      %v1113 = vpop.permute.xlu0 %1112
      %1116 = vrot.lane.b32.xlu0 %v1104, 24
      %v1117 = vpop.permute.xlu0 %1116
      %v1119 = vsel %vm450, %v609, %v1109
      %vm1120 = vcmask 130048
      %v1121 = vsel %vm1120, %v1119, %v1113
      %vm1122 = vcmask 195584
      %v1123 = vsel %vm1122, %v1121, %v1117
      %v1124 = vld [vmem:[%s337] sm:$0xff]
      %v1125 = vld [vmem:[%s337 + $0x8] sm:$0xff]
      %v1126 = vld [vmem:[%s337 + $0x10] sm:$0xff]
      %v1127 = vld [vmem:[%s337 + $0x18] sm:$0xff]
      %v1128 = vlaneseq
      %v1129 = vshrl.u32 %v1128, 7
      %v1130 = vsub.s32 1, %v1129
      %v1131 = vrot.slane %v364, %v1130
      %v1133 = vsel %vm373, %v1123, 0
      %1135 = vmatprep.subr.mxu0 0.0
      %1136 = vmatpush1.msra.mxu0 %v1124
      %1137 = vmatprep.subr.mxu0 0.0
      %1138 = vmatpush1.msra.mxu0 %v1125
      %1139 = vmatprep.subr.mxu0 0.0
      %1140 = vmatpush1.msra.mxu0 %v1126
      %1141 = vmatprep.subr.mxu0 0.0
      %1142 = vmatpush1.msra.mxu0 %v1127
      %1143 = vmatprep.subr.mxu0 0.0
      %1144 = vmatpush1.msra.mxu0 0.0
      %1145 = vmatprep.subr.mxu0 0.0
      %1146 = vmatpush1.msra.mxu0 0.0
      %1147 = vmatprep.subr.mxu0 0.0
      %1148 = vmatpush1.msra.mxu0 0.0
      %1149 = vmatprep.subr.mxu0 0.0
      %1150 = vmatpush1.msra.mxu0 0.0
      %1151 = vmatprep.subr.mxu0 0.0
      %1152 = vmatpush1.msra.mxu0 0.0
      %1153 = vmatprep.subr.mxu0 0.0
      %1154 = vmatpush1.msra.mxu0 0.0
      %1155 = vmatprep.subr.mxu0 0.0
      %1156 = vmatpush1.msra.mxu0 0.0
      %1157 = vmatprep.subr.mxu0 0.0
      %1158 = vmatpush1.msra.mxu0 0.0
      %1159 = vmatprep.subr.mxu0 0.0
      %1160 = vmatpush1.msra.mxu0 0.0
      %1161 = vmatprep.subr.mxu0 0.0
      %1162 = vmatpush1.msra.mxu0 0.0
      %1163 = vmatprep.subr.mxu0 0.0
      %1164 = vmatpush1.msra.mxu0 0.0
      %1165 = vmatprep.subr.mxu0 0.0
      %1166 = vmatpush1.msra.mxu0 0.0
      %1167 = vmatprep.subr.mxu0 0.0
      %1168 = vmatpush1.msra.mxu0 0.0
      %1169 = vmatprep.subr.mxu0 0.0
      %1170 = vmatpush1.msra.mxu0 0.0
      %1171 = vmatprep.subr.mxu0 0.0
      %1172 = vmatpush1.msra.mxu0 0.0
      %1173 = vmatprep.subr.mxu0 0.0
      %1174 = vmatpush1.msra.mxu0 0.0
      %1175 = vmatprep.subr.mxu0 0.0
      %1176 = vmatpush1.msra.mxu0 0.0
      %1177 = vmatprep.subr.mxu0 0.0
      %1178 = vmatpush1.msra.mxu0 0.0
      %1179 = vmatprep.subr.mxu0 0.0
      %1180 = vmatpush1.msra.mxu0 0.0
      %1181 = vmatprep.subr.mxu0 0.0
      %1182 = vmatpush1.msra.mxu0 0.0
      %1183 = vmatprep.subr.mxu0 0.0
      %1184 = vmatpush1.msra.mxu0 0.0
      %1185 = vmatprep.subr.mxu0 0.0
      %1186 = vmatpush1.msra.mxu0 0.0
      %1187 = vmatprep.subr.mxu0 0.0
      %1188 = vmatpush1.msra.mxu0 0.0
      %1189 = vmatprep.subr.mxu0 0.0
      %1190 = vmatpush1.msra.mxu0 0.0
      %1191 = vmatprep.subr.mxu0 0.0
      %1192 = vmatpush1.msra.mxu0 0.0
      %1193 = vmatprep.subr.mxu0 0.0
      %1194 = vmatpush1.msra.mxu0 0.0
      %1195 = vmatprep.subr.mxu0 0.0
      %1196 = vmatpush1.msra.mxu0 0.0
      %1197 = vmatprep.subr.mxu0 0.0
      %1198 = vmatpush1.msra.mxu0 0.0
      %1199 = vmatprep.mubr.f32.mxu0 0.0
      %1200 = vmatmul.mubr.f32.gmra.mrb[0].mxu0 %v1133
      %v1201 = vpop.f32.mrb[0].mxu0
      %v1202 = vadd.f32 %v1131, %v1201
      %v1203 = vpop.f32.mrb[0].mxu0
      %1204 = vdwg.mxu0
      %v1205 = vadd.f32 %v363, %v1202
      %v1206 = vsel %vm373, %v1205, 0.0
      %1207 = vadd.xlane.f32.xlu0 %v1206
      %v1208 = vpop.xlane.xlu0 %1207
      %v1209 = vrcp.pop 32.0
      %v1210 = vmul.f32 %v1208, %v1209
      %v1211 = vsub.f32 %v1205, %v1210
      %v1212 = vmul.f32 %v1211, %v1211
      %v1213 = vsel %vm373, %v1212, 0.0
      %1214 = vadd.xlane.f32.xlu0 %v1213
      %v1215 = vpop.xlane.xlu0 %1214
      %v1216 = vmul.f32 %v1215, %v1209
      %v1217 = vadd.f32 %v1216, 1e-05
      %v1218 = vrsqrt.pop %v1217
      %v1219 = vmul.f32 %v1211, %v1218
      %v1220 = vlaneseq
      %v1221 = vshrl.u32 %v1220, 7
      %v1222 = vsub.s32 2, %v1221
      %v1223 = vrot.slane %v364, %v1222
      %v1224 = vmul.f32 %v1219, %v1223
      %v1225 = vlaneseq
      %v1226 = vshrl.u32 %v1225, 7
      %v1227 = vsub.s32 3, %v1226
      %v1228 = vrot.slane %v364, %v1227
      %v1229 = vadd.f32 %v1224, %v1228
      %v1230 = vld [vmem:[%s342] sm:$0xff]
      %v1231 = vld [vmem:[%s342 + $0x8] sm:$0xff]
      %v1232 = vld [vmem:[%s342 + $0x10] sm:$0xff]
      %v1233 = vld [vmem:[%s342 + $0x18] sm:$0xff]
      %v1234 = vlaneseq
      %v1235 = vshrl.u32 %v1234, 7
      %v1236 = vsub.s32 4, %v1235
      %v1237 = vrot.slane %v364, %v1236
      %v1239 = vsel %vm373, %v1229, 0
      %1241 = vmatprep.subr.mxu0 0.0
      %1242 = vmatpush1.msra.mxu0 %v1230
      %1243 = vmatprep.subr.mxu0 0.0
      %1244 = vmatpush1.msra.mxu0 %v1231
      %1245 = vmatprep.subr.mxu0 0.0
      %1246 = vmatpush1.msra.mxu0 %v1232
      %1247 = vmatprep.subr.mxu0 0.0
      %1248 = vmatpush1.msra.mxu0 %v1233
      %1249 = vmatprep.subr.mxu0 0.0
      %1250 = vmatpush1.msra.mxu0 0.0
      %1251 = vmatprep.subr.mxu0 0.0
      %1252 = vmatpush1.msra.mxu0 0.0
      %1253 = vmatprep.subr.mxu0 0.0
      %1254 = vmatpush1.msra.mxu0 0.0
      %1255 = vmatprep.subr.mxu0 0.0
      %1256 = vmatpush1.msra.mxu0 0.0
      %1257 = vmatprep.subr.mxu0 0.0
      %1258 = vmatpush1.msra.mxu0 0.0
      %1259 = vmatprep.subr.mxu0 0.0
      %1260 = vmatpush1.msra.mxu0 0.0
      %1261 = vmatprep.subr.mxu0 0.0
      %1262 = vmatpush1.msra.mxu0 0.0
      %1263 = vmatprep.subr.mxu0 0.0
      %1264 = vmatpush1.msra.mxu0 0.0
      %1265 = vmatprep.subr.mxu0 0.0
      %1266 = vmatpush1.msra.mxu0 0.0
      %1267 = vmatprep.subr.mxu0 0.0
      %1268 = vmatpush1.msra.mxu0 0.0
      %1269 = vmatprep.subr.mxu0 0.0
      %1270 = vmatpush1.msra.mxu0 0.0
      %1271 = vmatprep.subr.mxu0 0.0
      %1272 = vmatpush1.msra.mxu0 0.0
      %1273 = vmatprep.subr.mxu0 0.0
      %1274 = vmatpush1.msra.mxu0 0.0
      %1275 = vmatprep.subr.mxu0 0.0
      %1276 = vmatpush1.msra.mxu0 0.0
      %1277 = vmatprep.subr.mxu0 0.0
      %1278 = vmatpush1.msra.mxu0 0.0
      %1279 = vmatprep.subr.mxu0 0.0
      %1280 = vmatpush1.msra.mxu0 0.0
      %1281 = vmatprep.subr.mxu0 0.0
      %1282 = vmatpush1.msra.mxu0 0.0
      %1283 = vmatprep.subr.mxu0 0.0
      %1284 = vmatpush1.msra.mxu0 0.0
      %1285 = vmatprep.subr.mxu0 0.0
      %1286 = vmatpush1.msra.mxu0 0.0
      %1287 = vmatprep.subr.mxu0 0.0
      %1288 = vmatpush1.msra.mxu0 0.0
      %1289 = vmatprep.subr.mxu0 0.0
      %1290 = vmatpush1.msra.mxu0 0.0
      %1291 = vmatprep.subr.mxu0 0.0
      %1292 = vmatpush1.msra.mxu0 0.0
      %1293 = vmatprep.subr.mxu0 0.0
      %1294 = vmatpush1.msra.mxu0 0.0
      %1295 = vmatprep.subr.mxu0 0.0
      %1296 = vmatpush1.msra.mxu0 0.0
      %1297 = vmatprep.subr.mxu0 0.0
      %1298 = vmatpush1.msra.mxu0 0.0
      %1299 = vmatprep.subr.mxu0 0.0
      %1300 = vmatpush1.msra.mxu0 0.0
      %1301 = vmatprep.subr.mxu0 0.0
      %1302 = vmatpush1.msra.mxu0 0.0
      %1303 = vmatprep.subr.mxu0 0.0
      %1304 = vmatpush1.msra.mxu0 0.0
      %1305 = vmatprep.mubr.f32.mxu0 0.0
      %1306 = vmatmul.mubr.f32.gmra.mrb[0].mxu0 %v1239
      %v1307 = vpop.f32.mrb[0].mxu0
      %v1308 = vadd.f32 %v1237, %v1307
      %v1309 = vpop.f32.mrb[0].mxu0
      %1310 = vdwg.mxu0
      %v1311 = vmax.f32 %v1308, 0.0
      %v1312 = vld [vmem:[%s347] sm:$0xff]
      %v1313 = vld [vmem:[%s347 + $0x8] sm:$0xff]
      %v1314 = vld [vmem:[%s347 + $0x10] sm:$0xff]
      %v1315 = vld [vmem:[%s347 + $0x18] sm:$0xff]
      %v1316 = vld [vmem:[%s347 + $0x20] sm:$0xff]
      %v1317 = vld [vmem:[%s347 + $0x28] sm:$0xff]
      %v1318 = vld [vmem:[%s347 + $0x30] sm:$0xff]
      %v1319 = vld [vmem:[%s347 + $0x38] sm:$0xff]
      %v1320 = vld [vmem:[%s347 + $0x40] sm:$0xff]
      %v1321 = vld [vmem:[%s347 + $0x48] sm:$0xff]
      %v1322 = vld [vmem:[%s347 + $0x50] sm:$0xff]
      %v1323 = vld [vmem:[%s347 + $0x58] sm:$0xff]
      %v1324 = vld [vmem:[%s347 + $0x60] sm:$0xff]
      %v1325 = vld [vmem:[%s347 + $0x68] sm:$0xff]
      %v1326 = vld [vmem:[%s347 + $0x70] sm:$0xff]
      %v1327 = vld [vmem:[%s347 + $0x78] sm:$0xff]
      %v1328 = vlaneseq
      %v1329 = vshrl.u32 %v1328, 7
      %v1330 = vsub.s32 5, %v1329
      %v1331 = vrot.slane %v364, %v1330
      %1332 = vmatprep.subr.mxu0 0.0
      %1333 = vmatpush1.msra.mxu0 %v1312
      %1334 = vmatprep.subr.mxu0 0.0
      %1335 = vmatpush1.msra.mxu0 %v1313
      %1336 = vmatprep.subr.mxu0 0.0
      %1337 = vmatpush1.msra.mxu0 %v1314
      %1338 = vmatprep.subr.mxu0 0.0
      %1339 = vmatpush1.msra.mxu0 %v1315
      %1340 = vmatprep.subr.mxu0 0.0
      %1341 = vmatpush1.msra.mxu0 %v1316
      %1342 = vmatprep.subr.mxu0 0.0
      %1343 = vmatpush1.msra.mxu0 %v1317
      %1344 = vmatprep.subr.mxu0 0.0
      %1345 = vmatpush1.msra.mxu0 %v1318
      %1346 = vmatprep.subr.mxu0 0.0
      %1347 = vmatpush1.msra.mxu0 %v1319
      %1348 = vmatprep.subr.mxu0 0.0
      %1349 = vmatpush1.msra.mxu0 %v1320
      %1350 = vmatprep.subr.mxu0 0.0
      %1351 = vmatpush1.msra.mxu0 %v1321
      %1352 = vmatprep.subr.mxu0 0.0
      %1353 = vmatpush1.msra.mxu0 %v1322
      %1354 = vmatprep.subr.mxu0 0.0
      %1355 = vmatpush1.msra.mxu0 %v1323
      %1356 = vmatprep.subr.mxu0 0.0
      %1357 = vmatpush1.msra.mxu0 %v1324
      %1358 = vmatprep.subr.mxu0 0.0
      %1359 = vmatpush1.msra.mxu0 %v1325
      %1360 = vmatprep.subr.mxu0 0.0
      %1361 = vmatpush1.msra.mxu0 %v1326
      %1362 = vmatprep.subr.mxu0 0.0
      %1363 = vmatpush1.msra.mxu0 %v1327
      %1364 = vmatprep.subr.mxu0 0.0
      %1365 = vmatpush1.msra.mxu0 0.0
      %1366 = vmatprep.subr.mxu0 0.0
      %1367 = vmatpush1.msra.mxu0 0.0
      %1368 = vmatprep.subr.mxu0 0.0
      %1369 = vmatpush1.msra.mxu0 0.0
      %1370 = vmatprep.subr.mxu0 0.0
      %1371 = vmatpush1.msra.mxu0 0.0
      %1372 = vmatprep.subr.mxu0 0.0
      %1373 = vmatpush1.msra.mxu0 0.0
      %1374 = vmatprep.subr.mxu0 0.0
      %1375 = vmatpush1.msra.mxu0 0.0
      %1376 = vmatprep.subr.mxu0 0.0
      %1377 = vmatpush1.msra.mxu0 0.0
      %1378 = vmatprep.subr.mxu0 0.0
      %1379 = vmatpush1.msra.mxu0 0.0
      %1380 = vmatprep.subr.mxu0 0.0
      %1381 = vmatpush1.msra.mxu0 0.0
      %1382 = vmatprep.subr.mxu0 0.0
      %1383 = vmatpush1.msra.mxu0 0.0
      %1384 = vmatprep.subr.mxu0 0.0
      %1385 = vmatpush1.msra.mxu0 0.0
      %1386 = vmatprep.subr.mxu0 0.0
      %1387 = vmatpush1.msra.mxu0 0.0
      %1388 = vmatprep.subr.mxu0 0.0
      %1389 = vmatpush1.msra.mxu0 0.0
      %1390 = vmatprep.subr.mxu0 0.0
      %1391 = vmatpush1.msra.mxu0 0.0
      %1392 = vmatprep.subr.mxu0 0.0
      %1393 = vmatpush1.msra.mxu0 0.0
      %1394 = vmatprep.subr.mxu0 0.0
      %1395 = vmatpush1.msra.mxu0 0.0
      %1396 = vmatprep.mubr.f32.mxu0 0.0
      %1397 = vmatmul.mubr.f32.gmra.mrb[0].mxu0 %v1311
      %v1398 = vpop.f32.mrb[0].mxu0
      %v1399 = vadd.f32 %v1331, %v1398
      %v1400 = vpop.f32.mrb[0].mxu0
      %1401 = vdwg.mxu0
      %v1402 = vadd.f32 %v1229, %v1399
      %v1403 = vsel %vm373, %v1402, 0.0
      %1404 = vadd.xlane.f32.xlu0 %v1403
      %v1405 = vpop.xlane.xlu0 %1404
      %v1406 = vmul.f32 %v1405, %v1209
      %v1407 = vsub.f32 %v1402, %v1406
      %v1408 = vmul.f32 %v1407, %v1407
      %v1409 = vsel %vm373, %v1408, 0.0
      %1410 = vadd.xlane.f32.xlu0 %v1409
      %v1411 = vpop.xlane.xlu0 %1410
      %v1412 = vmul.f32 %v1411, %v1209
      %v1413 = vadd.f32 %v1412, 1e-05
      %v1414 = vrsqrt.pop %v1413
      %v1415 = vmul.f32 %v1407, %v1414
      %v1416 = vlaneseq
      %v1417 = vshrl.u32 %v1416, 7
      %v1418 = vsub.s32 6, %v1417
      %v1419 = vrot.slane %v364, %v1418
      %v1420 = vmul.f32 %v1415, %v1419
      %v1421 = vlaneseq
      %v1422 = vshrl.u32 %v1421, 7
      %v1423 = vsub.s32 7, %v1422
      %v1424 = vrot.slane %v364, %v1423
      %v1425 = vadd.f32 %v1420, %v1424
      %1426 = vst.msk [vmem:[%s355] sm:$0xff] %vm373, %v1425
      %p1427 = scmp.lt.s32.totalorder %s21, 1
      %s1428 = scalar_select %p1427, %s21, 1
      %s1429 = smul.addr %s1428, 8
      %s1430 = scalar_lea.vmem %s6, %s1429
      // Predicated region
      $region49: #{transformer_encoder_forward.1} parent=43 // pred_check
        %p1431 = pneg %p203
      $region50: #{transformer_encoder_forward.1} parent=43 // pred_check_branch
        %1433 = sbr.rel (%p1431) target = $region52
      $region51: #{transformer_encoder_forward.1} parent=43 // pred_region
        _
      $region52: #{transformer_encoder_forward.1} parent=43 // pred_fallthru
        _
    $region44: #{transformer_encoder_forward.1} parent=5 // pred_fallthru
      _
    %p1434 = scmp.le.s32.totalorder 2, %s12
    // Predicated region
    $region53: #{transformer_encoder_forward.1} parent=5 // pred_check
      %p1435 = pneg %p1434
    $region54: #{transformer_encoder_forward.1} parent=5 // pred_check_branch
      %1437 = sbr.rel (%p1435) target = $region56
    $region55: #{transformer_encoder_forward.1} parent=5 // pred_region
      %s1438 = ssub.s32 %s12, 2
      // Predicated region
      $region57: #{transformer_encoder_forward.1} parent=55 // pred_check
        %p1439 = pneg %p209
      $region58: #{transformer_encoder_forward.1} parent=55 // pred_check_branch
        %1441 = sbr.rel (%p1439) target = $region60
      $region59: #{transformer_encoder_forward.1} parent=55 // pred_region
        %p1442 = scmp.lt.s32.totalorder %s23, 1
        %s1443 = scalar_select %p1442, %s23, 1
        %s1444 = smul.addr %s1443, 8
        %s1445 = scalar_lea.vmem %s6, %s1444
      $region60: #{transformer_encoder_forward.1} parent=55 // pred_fallthru
        _
    $region56: #{transformer_encoder_forward.1} parent=5 // pred_fallthru
      _
  $region6: #{transformer_encoder_forward.1} parent=0 // loop_footer
    %s16 = sadd.s32 1, %s12
  $region7: #{transformer_encoder_forward.1} parent=0 // loop_footer_branch
    %11 = sbr.rel target = $region3
  $region8: #{transformer_encoder_forward.1} parent=0 // loop_exit
    _

</llo_original>
